<compile_context>
chip_gen: v7x
topology: tpu7x:2x2x1
jax: 0.10.0
libtpu: 0.0.40
codegen_flags: <defaults>
</compile_context>

<pallas_src>
import jax
import jax.numpy as jnp
from jax.experimental import pallas as pl
from jax.experimental.pallas import tpu as pltpu

GINE_EPS = 0.0   # GINEConv eps (default, train_eps=False)
BN_EPS = 1e-5    # torch.nn.BatchNorm1d default eps
LANE = 128
SQRT1_2 = 0.7071067811865476


def _round_up(n, m):
    return ((n + m - 1) // m) * m


def _erf(x):
    # Abramowitz & Stegun 7.1.26, max abs error ~1.5e-7 (== exact erf at f32
    # precision).  Only exp / mul / add / where -> always lowers; exp is EUP.
    sgn = jnp.where(x >= 0.0, 1.0, -1.0)
    a = jnp.abs(x)
    t = 1.0 / (1.0 + 0.3275911 * a)
    poly = ((((1.061405429 * t - 1.453152027) * t + 1.421413741) * t
             - 0.284496736) * t + 0.254829592) * t
    return sgn * (1.0 - poly * jnp.exp(-a * a))


# ----------------------------- fused kernel ---------------------------------
# grid = (KN node tiles ["parallel"], KE edge tiles ["arbitrary"])
#   h_tile  = (2+eps) * x_tile + sum_{e : dst[e] in tile} ReLU(x[src[e]] + ea[e])
#   out     = BN2( h + Linear2(GELU(Linear1(BN1(h)))) )   (BN1/BN2 pre-folded)
def _gin_fused_kernel(x_ref, idx_ref, ea_ref, w1_ref, w2_ref, p_ref, out_ref):
    k = pl.program_id(1)                      # edge-tile (reduction) index
    n_ke = pl.num_programs(1)

    n_pad = x_ref.shape[0]                    # Np  (x fully resident for gather)
    tn = out_ref.shape[0]                     # node_tile
    te = ea_ref.shape[0]                      # edge_tile
    node_base = pl.multiple_of(pl.program_id(0) * tn, 8)

    # ---- init resident accumulator: residual fold (1+eps)*x + x = (2+eps)*x ----
    @pl.when(k == 0)
    def _init():
        out_ref[...] = (2.0 + GINE_EPS) * x_ref[pl.ds(node_base, tn), :]

    dst_row = idx_ref[0:1, :]                 # [1, te] int32, padded with -1
    src_row = idx_ref[1:2, :]                 # [1, te] int32, padded with 0

    # ---- gather x[src]: transposed one-hot [Np, te] built in-register --------
    giota = jax.lax.broadcasted_iota(jnp.int32, (n_pad, te), 0)
    src_ohT = (giota == src_row).astype(jnp.float32)
    x_src = jax.lax.dot_general(               # src_ohT^T @ x -> [te, Dp]
        src_ohT, x_ref[...],
        dimension_numbers=(((0,), (0,)), ((), ())),
        preferred_element_type=jnp.float32)

    msg = jnp.maximum(x_src + ea_ref[...], 0.0)          # ReLU(x_j + e_ij)

    # ---- scatter-add into this tile's nodes (padded edges: dst=-1 -> no row) --
    siota = node_base + jax.lax.broadcasted_iota(jnp.int32, (tn, te), 0)
    dst_oh = (siota == dst_row).astype(jnp.float32)       # [tn, te]
    out_ref[...] += jnp.dot(dst_oh, msg, preferred_element_type=jnp.float32)

    # ---- fused FFN + BN2 epilogue on the resident accumulator -----------------
    @pl.when(k == n_ke - 1)
    def _epilogue():
        h = out_ref[...]
        b1 = p_ref[0:1, :]                    # BN1-folded Linear1 bias
        b2 = p_ref[1:2, :]                    # Linear2 bias
        s2 = p_ref[2:3, :]                    # folded BN2 scale
        t2 = p_ref[3:4, :]                    # folded BN2 shift
        z = jnp.dot(h, w1_ref[...], preferred_element_type=jnp.float32) + b1
        z = 0.5 * z * (1.0 + _erf(z * SQRT1_2))           # exact GELU (erf form)
        z = jnp.dot(z, w2_ref[...], preferred_element_type=jnp.float32) + b2
        out_ref[...] = ((h + z) * s2 + t2).astype(out_ref.dtype)


def gin_layer(x, edge_index, edge_attr, p, *, node_splits=2, edge_tile=512):
    """x: [N, D] f32, edge_index: [2, E] int32 (row0=src j, row1=dst i), edge_attr: [E, D].

    node_splits: size of the "parallel" node-tile grid axis; set to the number of
    TensorCores (2 on v7x, 1 on v5e/v6e).  The gather matmul is recomputed per
    node tile, so keep it small.
    """
    N, D = x.shape
    E = edge_index.shape[1]
    f32 = jnp.float32

    Dp = _round_up(max(D, LANE), LANE)                    # lane-dense channel dim
    edge_tile = max(LANE, min(edge_tile, _round_up(E, LANE)))  # collapse small E
    Ep = _round_up(E, edge_tile)
    KE = Ep // edge_tile

    node_tile = _round_up(pl.cdiv(N, node_splits), 8)
    Np = node_tile * node_splits
    KN = node_splits
    # TODO(synk): for very large N, cap node_tile and switch the gather to a
    # DMA-gather / chunked-node variant instead of the full [Np, te] one-hot.

    # ---- padded operands (no dense [E, N] one-hot ever touches HBM) -----------
    xp = jnp.zeros((Np, Dp), f32).at[:N, :D].set(x.astype(f32))
    eap = jnp.zeros((Ep, Dp), f32).at[:E, :D].set(edge_attr.astype(f32))
    idx = jnp.zeros((8, Ep), jnp.int32)
    idx = idx.at[0, :].set(
        jnp.full((Ep,), -1, jnp.int32).at[:E].set(edge_index[1].astype(jnp.int32)))
    idx = idx.at[1, :E].set(edge_index[0].astype(jnp.int32))

    # ---- host-side folding: BN1 into Linear1, BN2 into scale/shift ------------
    s1 = p["bn1_gamma"] * jax.lax.rsqrt(p["bn1_var"] + BN_EPS)
    t1 = p["bn1_beta"] - p["bn1_mean"] * s1
    w1t = p["w1"].T                                       # torch Linear: x @ W.T + b
    w1t_fold = s1[:, None] * w1t
    b1_fold = t1 @ w1t + p["b1"]
    w2t = p["w2"].T
    s2 = p["bn2_gamma"] * jax.lax.rsqrt(p["bn2_var"] + BN_EPS)
    t2 = p["bn2_beta"] - p["bn2_mean"] * s2

    w1p = jnp.zeros((Dp, Dp), f32).at[:D, :D].set(w1t_fold.astype(f32))
    w2p = jnp.zeros((Dp, Dp), f32).at[:D, :D].set(w2t.astype(f32))
    packed = (jnp.zeros((8, Dp), f32)
              .at[0, :D].set(b1_fold.astype(f32))
              .at[1, :D].set(p["b2"].astype(f32))
              .at[2, :D].set(s2.astype(f32))
              .at[3, :D].set(t2.astype(f32)))

    # ---- VMEM budget from actual buffer sizes (cap at v7x's 64 MiB physical) --
    per_step = 4 * (Np * Dp + 8 * edge_tile + edge_tile * Dp + 2 * Dp * Dp
                    + 8 * Dp + node_tile * Dp)
    temps = 4 * (Np * edge_tile + node_tile * edge_tile + 3 * edge_tile * Dp
                 + 3 * node_tile * Dp)
    vmem_limit = int(min(max(2 * per_step + temps + (8 << 20), 32 << 20), 64 << 20))

    out = pl.pallas_call(
        _gin_fused_kernel,
        out_shape=jax.ShapeDtypeStruct((Np, Dp), f32),
        grid=(KN, KE),                                    # reduction axis last
        in_specs=[
            pl.BlockSpec((Np, Dp), lambda i, k: (0, 0)),          # x, resident
            pl.BlockSpec((8, edge_tile), lambda i, k: (0, k)),    # dst/src indices
            pl.BlockSpec((edge_tile, Dp), lambda i, k: (k, 0)),   # edge_attr tile
            pl.BlockSpec((Dp, Dp), lambda i, k: (0, 0)),          # W1' resident
            pl.BlockSpec((Dp, Dp), lambda i, k: (0, 0)),          # W2  resident
            pl.BlockSpec((8, Dp), lambda i, k: (0, 0)),           # packed per-ch params
        ],
        out_specs=pl.BlockSpec((node_tile, Dp), lambda i, k: (i, 0)),  # resident acc
        compiler_params=pltpu.CompilerParams(
            dimension_semantics=("parallel", "arbitrary"),
            vmem_limit_bytes=vmem_limit),
    )(xp, idx, eap, w1p, w2p, packed)

    return out[:N, :D].astype(x.dtype)


def gin_layer_ref(x, edge_index, edge_attr, p):
    """Pure-JAX reference (same eval-mode semantics)."""
    src, dst = edge_index[0], edge_index[1]
    msg = jax.nn.relu(x[src] + edge_attr)
    aggr = jnp.zeros_like(x).at[dst].add(msg)
    conv = (1.0 + GINE_EPS) * x + aggr
    h = x + conv

    def bn(v, g, b, m, var):
        return (v - m) / jnp.sqrt(var + BN_EPS) * g + b

    z = bn(h, p["bn1_gamma"], p["bn1_beta"], p["bn1_mean"], p["bn1_var"])
    z = z @ p["w1"].T + p["b1"]
    z = 0.5 * z * (1.0 + jax.lax.erf(z * SQRT1_2))        # exact GELU
    z = z @ p["w2"].T + p["b2"]
    y = h + z
    return bn(y, p["bn2_gamma"], p["bn2_beta"], p["bn2_mean"], p["bn2_var"])


if __name__ == "__main__":
    N, D, E = 200, 32, 300  # nodes, embed_dim, edges (exercises node/edge padding)

    key = jax.random.PRNGKey(0)
    ks = jax.random.split(key, 12)

    x = jax.random.normal(ks[0], (N, D), dtype=jnp.float32)
    edge_index = jax.random.randint(ks[1], (2, E), 0, N, dtype=jnp.int32)
    edge_attr = jax.random.normal(ks[2], (E, D), dtype=jnp.float32)

    params = {
        # ffn BatchNorm1d
        "bn1_gamma": jax.random.normal(ks[3], (D,), jnp.float32) * 0.1 + 1.0,
        "bn1_beta": jax.random.normal(ks[4], (D,), jnp.float32) * 0.1,
        "bn1_mean": jax.random.normal(ks[5], (D,), jnp.float32) * 0.1,
        "bn1_var": jax.random.uniform(ks[6], (D,), jnp.float32, 0.5, 1.5),
        # ffn Linear(D, D) x2  (torch layout: [out, in])
        "w1": jax.random.normal(ks[7], (D, D), jnp.float32) * (1.0 / jnp.sqrt(D)),
        "b1": jax.random.normal(ks[8], (D,), jnp.float32) * 0.05,
        "w2": jax.random.normal(ks[9], (D, D), jnp.float32) * (1.0 / jnp.sqrt(D)),
        "b2": jax.random.normal(ks[10], (D,), jnp.float32) * 0.05,
        # output BatchNorm1d
        "bn2_gamma": jax.random.normal(ks[11], (D,), jnp.float32) * 0.1 + 1.0,
        "bn2_beta": jnp.zeros((D,), jnp.float32) + 0.01,
        "bn2_mean": jnp.zeros((D,), jnp.float32),
        "bn2_var": jnp.ones((D,), jnp.float32),
    }

    out = gin_layer(x, edge_index, edge_attr, params)
    out = jax.block_until_ready(out)

    ref = gin_layer_ref(x, edge_index, edge_attr, params)
    assert out.shape == (N, D)
    assert jnp.allclose(out, ref, atol=2e-4, rtol=2e-4), "mismatch vs JAX reference"

    print("KERNEL_OK")
</pallas_src>

<mosaic_0001>
module attributes {stable_mosaic.version = 11 : i64} {
  func.func @_gin_fused_kernel(%arg0: i32, %arg1: i32, %arg2: memref<208x128xf32, #tpu.memory_space<vmem>>, %arg3: memref<8x384xi32, #tpu.memory_space<vmem>>, %arg4: memref<384x128xf32, #tpu.memory_space<vmem>>, %arg5: memref<128x128xf32, #tpu.memory_space<vmem>>, %arg6: memref<128x128xf32, #tpu.memory_space<vmem>>, %arg7: memref<8x128xf32, #tpu.memory_space<vmem>>, %arg8: memref<104x128xf32, #tpu.memory_space<vmem>>) attributes {dimension_semantics = [#tpu.dimension_semantics<parallel>, #tpu.dimension_semantics<arbitrary>], iteration_bounds = array<i64: 2, 1>, scalar_prefetch = 0 : i64, scratch_operands = 0 : i64, tpu.core_type = #tpu.core_type<tc>, window_params = [{pipeline_mode = #tpu.pipeline_mode<synchronous>, transform_indices = @transform_0, window_bounds = array<i64: 208, 128>}, {transform_indices = @transform_1, window_bounds = array<i64: 8, 384>}, {transform_indices = @transform_2, window_bounds = array<i64: 384, 128>}, {pipeline_mode = #tpu.pipeline_mode<synchronous>, transform_indices = @transform_3, window_bounds = array<i64: 128, 128>}, {pipeline_mode = #tpu.pipeline_mode<synchronous>, transform_indices = @transform_4, window_bounds = array<i64: 128, 128>}, {pipeline_mode = #tpu.pipeline_mode<synchronous>, transform_indices = @transform_5, window_bounds = array<i64: 8, 128>}, {transform_indices = @transform_6, window_bounds = array<i64: 104, 128>}]} {
    %c104_i32 = arith.constant 104 : i32
    %0 = arith.muli %arg0, %c104_i32 : i32
    %1 = tpu.assume_multiple %0, 8 : i32
    %c0_i32 = arith.constant 0 : i32
    %2 = arith.cmpi eq, %arg1, %c0_i32 : i32
    %3 = arith.extui %2 : i1 to i32
    %c0_i32_0 = arith.constant 0 : i32
    %4 = arith.cmpi ne, %3, %c0_i32_0 : i32
    scf.if %4 {
      %32 = arith.index_cast %1 : i32 to index
      %c0_15 = arith.constant 0 : index
      %33 = vector.load %arg2[%32, %c0_15] : memref<208x128xf32, #tpu.memory_space<vmem>>, vector<104x128xf32>
      %cst_16 = arith.constant 2.000000e+00 : f32
      %34 = vector.broadcast %cst_16 : f32 to vector<104x128xf32>
      %35 = arith.mulf %34, %33 : vector<104x128xf32>
      %c0_17 = arith.constant 0 : index
      %c0_18 = arith.constant 0 : index
      %36 = vector.load %arg8[%c0_17, %c0_18] : memref<104x128xf32, #tpu.memory_space<vmem>>, vector<104x128xf32>
      tpu.vector_store %arg8[%c0_17, %c0_18], %35 {strides = array<i32>} : memref<104x128xf32, #tpu.memory_space<vmem>>, vector<104x128xf32>,
    } else {
    }
    %c0 = arith.constant 0 : index
    %c0_1 = arith.constant 0 : index
    %5 = vector.load %arg3[%c0, %c0_1] : memref<8x384xi32, #tpu.memory_space<vmem>>, vector<1x384xi32>
    %c1 = arith.constant 1 : index
    %c0_2 = arith.constant 0 : index
    %6 = vector.load %arg3[%c1, %c0_2] : memref<8x384xi32, #tpu.memory_space<vmem>>, vector<1x384xi32>
    %7 = tpu.iota {dimensions = array<i32: 0>} : vector<208x384xi32>
    %8 = vector.broadcast %6 : vector<1x384xi32> to vector<208x384xi32>
    %9 = arith.cmpi eq, %7, %8 : vector<208x384xi32>
    %10 = arith.extui %9 : vector<208x384xi1> to vector<208x384xi32>
    %11 = arith.sitofp %10 : vector<208x384xi32> to vector<208x384xf32>
    %c0_3 = arith.constant 0 : index
    %c0_4 = arith.constant 0 : index
    %12 = vector.load %arg2[%c0_3, %c0_4] : memref<208x128xf32, #tpu.memory_space<vmem>>, vector<208x128xf32>
    %cst = arith.constant dense<0.000000e+00> : vector<384x128xf32>
    %13 = tpu.matmul %11, %12, %cst {dimension_numbers = #tpu.dot_dimension_numbers<[0], [0], [1], [1], [0, 1, 1, 1], [], []>} : vector<208x384xf32>, vector<208x128xf32>, vector<384x128xf32> -> vector<384x128xf32>
    %c0_5 = arith.constant 0 : index
    %c0_6 = arith.constant 0 : index
    %14 = vector.load %arg4[%c0_5, %c0_6] : memref<384x128xf32, #tpu.memory_space<vmem>>, vector<384x128xf32>
    %15 = arith.addf %13, %14 : vector<384x128xf32>
    %cst_7 = arith.constant 0.000000e+00 : f32
    %16 = vector.broadcast %cst_7 : f32 to vector<384x128xf32>
    %17 = arith.maximumf %15, %16 : vector<384x128xf32>
    %18 = tpu.iota {dimensions = array<i32: 0>} : vector<104x384xi32>
    %19 = vector.broadcast %1 : i32 to vector<104x384xi32>
    %20 = arith.addi %19, %18 : vector<104x384xi32>
    %21 = vector.broadcast %5 : vector<1x384xi32> to vector<104x384xi32>
    %22 = arith.cmpi eq, %20, %21 : vector<104x384xi32>
    %23 = arith.extui %22 : vector<104x384xi1> to vector<104x384xi32>
    %24 = arith.sitofp %23 : vector<104x384xi32> to vector<104x384xf32>
    %c0_8 = arith.constant 0 : index
    %c0_9 = arith.constant 0 : index
    %25 = vector.load %arg8[%c0_8, %c0_9] : memref<104x128xf32, #tpu.memory_space<vmem>>, vector<104x128xf32>
    %cst_10 = arith.constant dense<0.000000e+00> : vector<104x128xf32>
    %26 = tpu.matmul %24, %17, %cst_10 {dimension_numbers = #tpu.dot_dimension_numbers<[1], [0], [0], [1], [0, 0, 1, 1], [], []>} : vector<104x384xf32>, vector<384x128xf32>, vector<104x128xf32> -> vector<104x128xf32>
    %27 = arith.addf %25, %26 : vector<104x128xf32>
    %c0_11 = arith.constant 0 : index
    %c0_12 = arith.constant 0 : index
    %28 = vector.load %arg8[%c0_11, %c0_12] : memref<104x128xf32, #tpu.memory_space<vmem>>, vector<104x128xf32>
    tpu.vector_store %arg8[%c0_11, %c0_12], %27 {strides = array<i32>} : memref<104x128xf32, #tpu.memory_space<vmem>>, vector<104x128xf32>,
    %c0_i32_13 = arith.constant 0 : i32
    %29 = arith.cmpi eq, %arg1, %c0_i32_13 : i32
    %30 = arith.extui %29 : i1 to i32
    %c0_i32_14 = arith.constant 0 : i32
    %31 = arith.cmpi ne, %30, %c0_i32_14 : i32
    scf.if %31 {
      %c0_15 = arith.constant 0 : index
      %c0_16 = arith.constant 0 : index
      %32 = vector.load %arg8[%c0_15, %c0_16] : memref<104x128xf32, #tpu.memory_space<vmem>>, vector<104x128xf32>
      %c0_17 = arith.constant 0 : index
      %c0_18 = arith.constant 0 : index
      %33 = vector.load %arg7[%c0_17, %c0_18] : memref<8x128xf32, #tpu.memory_space<vmem>>, vector<1x128xf32>
      %c1_19 = arith.constant 1 : index
      %c0_20 = arith.constant 0 : index
      %34 = vector.load %arg7[%c1_19, %c0_20] : memref<8x128xf32, #tpu.memory_space<vmem>>, vector<1x128xf32>
      %c2 = arith.constant 2 : index
      %c0_21 = arith.constant 0 : index
      %35 = vector.load %arg7[%c2, %c0_21] : memref<8x128xf32, #tpu.memory_space<vmem>>, vector<1x128xf32>
      %c3 = arith.constant 3 : index
      %c0_22 = arith.constant 0 : index
      %36 = vector.load %arg7[%c3, %c0_22] : memref<8x128xf32, #tpu.memory_space<vmem>>, vector<1x128xf32>
      %c0_23 = arith.constant 0 : index
      %c0_24 = arith.constant 0 : index
      %37 = vector.load %arg5[%c0_23, %c0_24] : memref<128x128xf32, #tpu.memory_space<vmem>>, vector<128x128xf32>
      %cst_25 = arith.constant dense<0.000000e+00> : vector<104x128xf32>
      %38 = tpu.matmul %32, %37, %cst_25 {dimension_numbers = #tpu.dot_dimension_numbers<[1], [0], [0], [1], [0, 0, 1, 1], [], []>} : vector<104x128xf32>, vector<128x128xf32>, vector<104x128xf32> -> vector<104x128xf32>
      %39 = vector.broadcast %33 : vector<1x128xf32> to vector<104x128xf32>
      %40 = arith.addf %38, %39 : vector<104x128xf32>
      %cst_26 = arith.constant 5.000000e-01 : f32
      %41 = vector.broadcast %cst_26 : f32 to vector<104x128xf32>
      %42 = arith.mulf %41, %40 : vector<104x128xf32>
      %cst_27 = arith.constant 0.707106769 : f32
      %43 = vector.broadcast %cst_27 : f32 to vector<104x128xf32>
      %44 = arith.mulf %40, %43 : vector<104x128xf32>
      %cst_28 = arith.constant 0.000000e+00 : f32
      %45 = vector.broadcast %cst_28 : f32 to vector<104x128xf32>
      %46 = arith.cmpf oge, %44, %45 : vector<104x128xf32>
      %cst_29 = arith.constant 1.000000e+00 : f32
      %cst_30 = arith.constant -1.000000e+00 : f32
      %47 = vector.broadcast %cst_29 : f32 to vector<104x128xf32>
      %48 = vector.broadcast %cst_30 : f32 to vector<104x128xf32>
      %49 = arith.select %46, %47, %48 : vector<104x128xi1>, vector<104x128xf32>
      %50 = math.absf %44 : vector<104x128xf32>
      %cst_31 = arith.constant 0.327591091 : f32
      %51 = vector.broadcast %cst_31 : f32 to vector<104x128xf32>
      %52 = arith.mulf %51, %50 : vector<104x128xf32>
      %cst_32 = arith.constant 1.000000e+00 : f32
      %53 = vector.broadcast %cst_32 : f32 to vector<104x128xf32>
      %54 = arith.addf %53, %52 : vector<104x128xf32>
      %cst_33 = arith.constant 1.000000e+00 : f32
      %55 = vector.broadcast %cst_33 : f32 to vector<104x128xf32>
      %56 = arith.divf %55, %54 : vector<104x128xf32>
      %cst_34 = arith.constant 1.06140542 : f32
      %57 = vector.broadcast %cst_34 : f32 to vector<104x128xf32>
      %58 = arith.mulf %57, %56 : vector<104x128xf32>
      %cst_35 = arith.constant 1.45315206 : f32
      %59 = vector.broadcast %cst_35 : f32 to vector<104x128xf32>
      %60 = arith.subf %58, %59 : vector<104x128xf32>
      %61 = arith.mulf %60, %56 : vector<104x128xf32>
      %cst_36 = arith.constant 1.42141378 : f32
      %62 = vector.broadcast %cst_36 : f32 to vector<104x128xf32>
      %63 = arith.addf %61, %62 : vector<104x128xf32>
      %64 = arith.mulf %63, %56 : vector<104x128xf32>
      %cst_37 = arith.constant 0.284496725 : f32
      %65 = vector.broadcast %cst_37 : f32 to vector<104x128xf32>
      %66 = arith.subf %64, %65 : vector<104x128xf32>
      %67 = arith.mulf %66, %56 : vector<104x128xf32>
      %cst_38 = arith.constant 0.254829586 : f32
      %68 = vector.broadcast %cst_38 : f32 to vector<104x128xf32>
      %69 = arith.addf %67, %68 : vector<104x128xf32>
      %70 = arith.mulf %69, %56 : vector<104x128xf32>
      %cst_39 = arith.constant 0.000000e+00 : f32
      %71 = vector.broadcast %cst_39 : f32 to vector<104x128xf32>
      %72 = arith.subf %71, %50 : vector<104x128xf32>
      %73 = arith.mulf %72, %50 : vector<104x128xf32>
      %74 = math.exp %73 : vector<104x128xf32>
      %75 = arith.mulf %70, %74 : vector<104x128xf32>
      %cst_40 = arith.constant 1.000000e+00 : f32
      %76 = vector.broadcast %cst_40 : f32 to vector<104x128xf32>
      %77 = arith.subf %76, %75 : vector<104x128xf32>
      %78 = arith.mulf %49, %77 : vector<104x128xf32>
      %cst_41 = arith.constant 1.000000e+00 : f32
      %79 = vector.broadcast %cst_41 : f32 to vector<104x128xf32>
      %80 = arith.addf %79, %78 : vector<104x128xf32>
      %81 = arith.mulf %42, %80 : vector<104x128xf32>
      %c0_42 = arith.constant 0 : index
      %c0_43 = arith.constant 0 : index
      %82 = vector.load %arg6[%c0_42, %c0_43] : memref<128x128xf32, #tpu.memory_space<vmem>>, vector<128x128xf32>
      %cst_44 = arith.constant dense<0.000000e+00> : vector<104x128xf32>
      %83 = tpu.matmul %81, %82, %cst_44 {dimension_numbers = #tpu.dot_dimension_numbers<[1], [0], [0], [1], [0, 0, 1, 1], [], []>} : vector<104x128xf32>, vector<128x128xf32>, vector<104x128xf32> -> vector<104x128xf32>
      %84 = vector.broadcast %34 : vector<1x128xf32> to vector<104x128xf32>
      %85 = arith.addf %83, %84 : vector<104x128xf32>
      %86 = arith.addf %32, %85 : vector<104x128xf32>
      %87 = vector.broadcast %35 : vector<1x128xf32> to vector<104x128xf32>
      %88 = arith.mulf %86, %87 : vector<104x128xf32>
      %89 = vector.broadcast %36 : vector<1x128xf32> to vector<104x128xf32>
      %90 = arith.addf %88, %89 : vector<104x128xf32>
      %c0_45 = arith.constant 0 : index
      %c0_46 = arith.constant 0 : index
      %91 = vector.load %arg8[%c0_45, %c0_46] : memref<104x128xf32, #tpu.memory_space<vmem>>, vector<104x128xf32>
      tpu.vector_store %arg8[%c0_45, %c0_46], %90 {strides = array<i32>} : memref<104x128xf32, #tpu.memory_space<vmem>>, vector<104x128xf32>,
    } else {
    }
    return
  }
  func.func @transform_0(%arg0: i32, %arg1: i32) -> (i32, i32) {
    %c0_i32 = arith.constant 0 : i32
    %c0_i32_0 = arith.constant 0 : i32
    %c0_i32_1 = arith.constant 0 : i32
    return %c0_i32, %c0_i32_0 : i32, i32
  }
  func.func @transform_1(%arg0: i32, %arg1: i32) -> (i32, i32) {
    %c0_i32 = arith.constant 0 : i32
    %c0_i32_0 = arith.constant 0 : i32
    return %c0_i32, %arg1 : i32, i32
  }
  func.func @transform_2(%arg0: i32, %arg1: i32) -> (i32, i32) {
    %c0_i32 = arith.constant 0 : i32
    %c0_i32_0 = arith.constant 0 : i32
    return %arg1, %c0_i32 : i32, i32
  }
  func.func @transform_3(%arg0: i32, %arg1: i32) -> (i32, i32) {
    %c0_i32 = arith.constant 0 : i32
    %c0_i32_0 = arith.constant 0 : i32
    %c0_i32_1 = arith.constant 0 : i32
    return %c0_i32, %c0_i32_0 : i32, i32
  }
  func.func @transform_4(%arg0: i32, %arg1: i32) -> (i32, i32) {
    %c0_i32 = arith.constant 0 : i32
    %c0_i32_0 = arith.constant 0 : i32
    %c0_i32_1 = arith.constant 0 : i32
    return %c0_i32, %c0_i32_0 : i32, i32
  }
  func.func @transform_5(%arg0: i32, %arg1: i32) -> (i32, i32) {
    %c0_i32 = arith.constant 0 : i32
    %c0_i32_0 = arith.constant 0 : i32
    %c0_i32_1 = arith.constant 0 : i32
    return %c0_i32, %c0_i32_0 : i32, i32
  }
  func.func @transform_6(%arg0: i32, %arg1: i32) -> (i32, i32) {
    %c0_i32 = arith.constant 0 : i32
    %c0_i32_0 = arith.constant 0 : i32
    return %arg0, %c0_i32 : i32, i32
  }
}

</mosaic_0001>

<llo_original>
// kernel: tpu_custom_call.1
$region0: #{tpu_custom_call.1}
  #allocation0 [shape = 'u32[]', space=smem, size = 0x4, offset = 0x4, fixed_abs, tag = 'smem constant byte address 0x4 - core index']
  #allocation1 [shape = 'u32[144,128]{1,0:T(1,128)}', space=vmem, size = 0x12000, scoped, tag = 'internal scratch']
  %s0 = inlined_call_operand.hbm [shape: f32[208,128], index: 0, kind: input, shape index: {}]
  %s1 = inlined_call_operand.hbm [shape: s32[8,384], index: 1, kind: input, shape index: {}]
  %s2 = inlined_call_operand.hbm [shape: f32[384,128], index: 2, kind: input, shape index: {}]
  %s3 = inlined_call_operand.hbm [shape: f32[128,128], index: 3, kind: input, shape index: {}]
  %s4 = inlined_call_operand.hbm [shape: f32[128,128], index: 4, kind: input, shape index: {}]
  %s5 = inlined_call_operand.vmem [shape: f32[8,128], index: 5, kind: input, shape index: {}]
  %s6 = inlined_call_operand.hbm [shape: f32[208,128], index: 6, kind: output, shape index: {}]
  %s7 = sld [smem:[#allocation0]]
  $region85: #{tpu_custom_call.1} parent=0
    _
  %s9 = ssub.s32 1, %s7
  %s10 = scalar_select 0, %s9, %s7
  $region1: #{tpu_custom_call.1} parent=0
    #allocation2 [shape = 'u8[106496]{0}', space=vmem, size = 0x1a000, scoped, tag = 'input window, operand 0, single buffered']
    #allocation3 [shape = 's32[2]{0}', space=sflag, size = 0x8, scoped, tag = 'scoped memory for tpu_custom_call.1']
    #allocation4 [shape = 's32[2]{0}', space=sflag, size = 0x8, scoped, tag = 'scoped memory for tpu_custom_call.1']
    #allocation5 [shape = 'u8[12288]{0}', space=vmem, size = 0x3000, scoped, tag = 'input window, operand 1, single buffered']
    #allocation6 [shape = 's32[1]{0}', space=sflag, size = 0x4, scoped, tag = 'scoped memory for tpu_custom_call.1']
    #allocation7 [shape = 'u8[196608]{0}', space=vmem, size = 0x30000, scoped, tag = 'input window, operand 2, single buffered']
    #allocation8 [shape = 'u8[65536]{0}', space=vmem, size = 0x10000, scoped, tag = 'input window, operand 3, single buffered']
    #allocation9 [shape = 's32[1]{0}', space=sflag, size = 0x4, scoped, tag = 'scoped memory for tpu_custom_call.1']
    #allocation10 [shape = 'u8[65536]{0}', space=vmem, size = 0x10000, scoped, tag = 'input window, operand 4, single buffered']
    #allocation11 [shape = 'u8[106496]{0}', space=vmem, size = 0x1a000, scoped, tag = 'output window, operand 0']
    %11 = vsyncpa [#allocation3], 0
    %12 = vsyncpa [#allocation6], 0
    %13 = vsyncpa [#allocation9], 0
    %14 = vsyncpa [#allocation4], 0
    %s15 = scalar_lea.sflag [#allocation4], 1
    %16 = vsyncpa %s15, 0
    loop: start=0, step=1, limit=4
    $region2: #{tpu_custom_call.1} parent=1 // loop_pre_header
      _
    $region3: #{tpu_custom_call.1} parent=1 // loop_header
      %s18 = sphi 0, %s22
      %p19 = scmp.ge.s32.totalorder %s18, 4
      %s25 = sphi 0, %s37
      %s26 = sphi 0, %s33
      %s27 = sphi 0, %s25
      %s28 = sphi 0, %s26
      %s29 = sphi 0, %s27
      %s30 = sphi 0, %s28
      %s38 = sphi 0, %s38
      %s40 = sphi 0, %s38
      %s41 = sphi 0, %s40
      %s55 = sphi 0, %s41
      %s61 = sphi 0, %s63
      %s64 = sphi 0, %s61
      %s65 = sphi 0, %s64
      %s81 = sphi 0, %s65
      %s87 = sphi 0, %s89
      %s90 = sphi 0, %s87
      %s91 = sphi 0, %s90
      %s107 = sphi 0, %s91
      %s111 = sphi 0, %s111
      %s113 = sphi 0, %s111
      %s114 = sphi 0, %s113
      %s128 = sphi 0, %s114
      %s132 = sphi 0, %s132
      %s134 = sphi 0, %s132
      %s135 = sphi 0, %s134
      %s149 = sphi 0, %s135
      %s153 = sphi 0, %s153
      %s155 = sphi 0, %s153
      %s156 = sphi 0, %s155
      %s170 = sphi 0, %s156
      %s176 = sphi 0, %s178
      %s179 = sphi 0, %s176
      %s180 = sphi 0, %s179
      %s196 = sphi 0, %s180
    $region4: #{tpu_custom_call.1} parent=1 // loop_header_branch
      %21 = sbr.rel (%p19) target = $region8
    $region5: #{tpu_custom_call.1} parent=1 // loop_body
      %s23 = ssub.s32 %s18, 1
      %s24 = ssub.s32 %s18, 2
      %s31 = sadd.s32 1, %s26
      %p32 = scmp.ge.s32.totalorder %s31, 1
      %s33 = scalar_select %p32, 0, %s31
      %s34 = sadd.s32 1, %s25
      %s35 = scalar_select %p32, %s34, %s25
      %p36 = scmp.ge.s32.totalorder %s35, 2
      %s37 = scalar_select %p36, 0, %s35
      %s39 = sadd.s32 %s38, 1
      %p42 = scmp.eq.s32.totalorder %s18, 1
      %p43 = scmp.ne.s32.totalorder %s38, %s40
      %p44 = scmp.eq.s32.totalorder %s18, 0
      %p45 = por %p43, %p44
      %p46 = scmp.ne.s32.totalorder %s38, %s40
      %p47 = scmp.eq.s32.totalorder %s23, 1
      %p48 = por %p46, %p47
      %p49 = scmp.ne.s32.totalorder %s40, %s41
      %p50 = scmp.eq.s32.totalorder %s23, 0
      %p51 = por %p49, %p50
      %p52 = scmp.ne.s32.totalorder %s40, %s41
      %p53 = scmp.eq.s32.totalorder %s24, 1
      %p54 = por %p52, %p53
      %p56 = scmp.ne.s32.totalorder %s41, %s55
      %p57 = scmp.eq.s32.totalorder %s24, 0
      %p58 = por %p56, %p57
      %s59 = ssub.s32 %s26, %s33
      %p60 = scmp.eq.s32.totalorder %s59, 0
      %s62 = sadd.s32 %s61, 1
      %s63 = scalar_select %p60, %s61, %s62
      %p66 = pneg %p60
      %p67 = scmp.eq.s32.totalorder %s18, 1
      %p68 = por %p66, %p67
      %p69 = scmp.ne.s32.totalorder %s61, %s64
      %p70 = scmp.eq.s32.totalorder %s18, 0
      %p71 = por %p69, %p70
      %p72 = scmp.ne.s32.totalorder %s61, %s64
      %p73 = scmp.eq.s32.totalorder %s23, 1
      %p74 = por %p72, %p73
      %p75 = scmp.ne.s32.totalorder %s64, %s65
      %p76 = scmp.eq.s32.totalorder %s23, 0
      %p77 = por %p75, %p76
      %p78 = scmp.ne.s32.totalorder %s64, %s65
      %p79 = scmp.eq.s32.totalorder %s24, 1
      %p80 = por %p78, %p79
      %p82 = scmp.ne.s32.totalorder %s65, %s81
      %p83 = scmp.eq.s32.totalorder %s24, 0
      %p84 = por %p82, %p83
      %s85 = ssub.s32 %s26, %s33
      %p86 = scmp.eq.s32.totalorder %s85, 0
      %s88 = sadd.s32 %s87, 1
      %s89 = scalar_select %p86, %s87, %s88
      %p92 = pneg %p86
      %p93 = scmp.eq.s32.totalorder %s18, 1
      %p94 = por %p92, %p93
      %p95 = scmp.ne.s32.totalorder %s87, %s90
      %p96 = scmp.eq.s32.totalorder %s18, 0
      %p97 = por %p95, %p96
      %p98 = scmp.ne.s32.totalorder %s87, %s90
      %p99 = scmp.eq.s32.totalorder %s23, 1
      %p100 = por %p98, %p99
      %p101 = scmp.ne.s32.totalorder %s90, %s91
      %p102 = scmp.eq.s32.totalorder %s23, 0
      %p103 = por %p101, %p102
      %p104 = scmp.ne.s32.totalorder %s90, %s91
      %p105 = scmp.eq.s32.totalorder %s24, 1
      %p106 = por %p104, %p105
      %p108 = scmp.ne.s32.totalorder %s91, %s107
      %p109 = scmp.eq.s32.totalorder %s24, 0
      %p110 = por %p108, %p109
      %s112 = sadd.s32 %s111, 1
      %p115 = scmp.eq.s32.totalorder %s18, 1
      %p116 = scmp.ne.s32.totalorder %s111, %s113
      %p117 = scmp.eq.s32.totalorder %s18, 0
      %p118 = por %p116, %p117
      %p119 = scmp.ne.s32.totalorder %s111, %s113
      %p120 = scmp.eq.s32.totalorder %s23, 1
      %p121 = por %p119, %p120
      %p122 = scmp.ne.s32.totalorder %s113, %s114
      %p123 = scmp.eq.s32.totalorder %s23, 0
      %p124 = por %p122, %p123
      %p125 = scmp.ne.s32.totalorder %s113, %s114
      %p126 = scmp.eq.s32.totalorder %s24, 1
      %p127 = por %p125, %p126
      %p129 = scmp.ne.s32.totalorder %s114, %s128
      %p130 = scmp.eq.s32.totalorder %s24, 0
      %p131 = por %p129, %p130
      %s133 = sadd.s32 %s132, 1
      %p136 = scmp.eq.s32.totalorder %s18, 1
      %p137 = scmp.ne.s32.totalorder %s132, %s134
      %p138 = scmp.eq.s32.totalorder %s18, 0
      %p139 = por %p137, %p138
      %p140 = scmp.ne.s32.totalorder %s132, %s134
      %p141 = scmp.eq.s32.totalorder %s23, 1
      %p142 = por %p140, %p141
      %p143 = scmp.ne.s32.totalorder %s134, %s135
      %p144 = scmp.eq.s32.totalorder %s23, 0
      %p145 = por %p143, %p144
      %p146 = scmp.ne.s32.totalorder %s134, %s135
      %p147 = scmp.eq.s32.totalorder %s24, 1
      %p148 = por %p146, %p147
      %p150 = scmp.ne.s32.totalorder %s135, %s149
      %p151 = scmp.eq.s32.totalorder %s24, 0
      %p152 = por %p150, %p151
      %s154 = sadd.s32 %s153, 1
      %p157 = scmp.eq.s32.totalorder %s18, 1
      %p158 = scmp.ne.s32.totalorder %s153, %s155
      %p159 = scmp.eq.s32.totalorder %s18, 0
      %p160 = por %p158, %p159
      %p161 = scmp.ne.s32.totalorder %s153, %s155
      %p162 = scmp.eq.s32.totalorder %s23, 1
      %p163 = por %p161, %p162
      %p164 = scmp.ne.s32.totalorder %s155, %s156
      %p165 = scmp.eq.s32.totalorder %s23, 0
      %p166 = por %p164, %p165
      %p167 = scmp.ne.s32.totalorder %s155, %s156
      %p168 = scmp.eq.s32.totalorder %s24, 1
      %p169 = por %p167, %p168
      %p171 = scmp.ne.s32.totalorder %s156, %s170
      %p172 = scmp.eq.s32.totalorder %s24, 0
      %p173 = por %p171, %p172
      %s174 = ssub.s32 %s25, %s37
      %p175 = scmp.eq.s32.totalorder %s174, 0
      %s177 = sadd.s32 %s176, 1
      %s178 = scalar_select %p175, %s176, %s177
      %p181 = pneg %p175
      %p182 = scmp.eq.s32.totalorder %s18, 1
      %p183 = por %p181, %p182
      %p184 = scmp.ne.s32.totalorder %s176, %s179
      %p185 = scmp.eq.s32.totalorder %s18, 0
      %p186 = por %p184, %p185
      %p187 = scmp.ne.s32.totalorder %s176, %s179
      %p188 = scmp.eq.s32.totalorder %s23, 1
      %p189 = por %p187, %p188
      %p190 = scmp.ne.s32.totalorder %s179, %s180
      %p191 = scmp.eq.s32.totalorder %s23, 0
      %p192 = por %p190, %p191
      %p193 = scmp.ne.s32.totalorder %s179, %s180
      %p194 = scmp.eq.s32.totalorder %s24, 1
      %p195 = por %p193, %p194
      %p197 = scmp.ne.s32.totalorder %s180, %s196
      %p198 = scmp.eq.s32.totalorder %s24, 0
      %p199 = por %p197, %p198
      %p200 = scmp.le.s32.totalorder 1, %s18
      %p201 = scmp.lt.s32.totalorder %s18, 3
      %p202 = pnand %p200, %p201
      %p203 = pneg %p202
      // Predicated region
      $region9: #{tpu_custom_call.1} parent=5 // pred_check
        _
      $region10: #{tpu_custom_call.1} parent=5 // pred_check_branch
        %205 = sbr.rel (%p202) target = $region12
      $region11: #{tpu_custom_call.1} parent=5 // pred_region
        %s206 = ssub.s32 %s18, 1
        // Predicated region
        $region13: #{tpu_custom_call.1} parent=11 // pred_check
          %p207 = pneg %p51
        $region14: #{tpu_custom_call.1} parent=11 // pred_check_branch
          %209 = sbr.rel (%p207) target = $region16
        $region15: #{tpu_custom_call.1} parent=11 // pred_region
          %s211 = ssub.s32 3328, 3328
          %212 = vsyncadd [#allocation3], %s211
          %s213 = sshll.u32 [#allocation2], 4
          %s214 = int_to_ptr.vmem [resolvable:$true] %s213
          %219 = dma.hbm_to_vmem [thread:$0]  %s0, 3328, %s214, [#allocation3], 128, 128, 8
        $region16: #{tpu_custom_call.1} parent=11 // pred_fallthru
          _
        // Predicated region
        $region17: #{tpu_custom_call.1} parent=11 // pred_check
          %p220 = pneg %p77
        $region18: #{tpu_custom_call.1} parent=11 // pred_check_branch
          %222 = sbr.rel (%p220) target = $region20
        $region19: #{tpu_custom_call.1} parent=11 // pred_region
          %s223 = smul.u32 3, %s28
          %s225 = ssub.s32 384, 384
          %226 = vsyncadd [#allocation6], %s225
          %s227 = smul.addr %s223, 128
          %s228 = scalar_lea.hbm %s1, %s227
          %s230 = sshll.u32 [#allocation5], 4
          %s231 = int_to_ptr.vmem [resolvable:$true] %s230
          %233 = dma.hbm_to_vmem [thread:$0]  %s228, 384, %s231, [#allocation6]
        $region20: #{tpu_custom_call.1} parent=11 // pred_fallthru
          _
        // Predicated region
        $region21: #{tpu_custom_call.1} parent=11 // pred_check
          %p234 = pneg %p103
        $region22: #{tpu_custom_call.1} parent=11 // pred_check_branch
          %236 = sbr.rel (%p234) target = $region24
        $region23: #{tpu_custom_call.1} parent=11 // pred_region
          %s237 = smul.u32 48, %s28
          %s239 = ssub.s32 6144, 6144
          %240 = vsyncadd [#allocation6], %s239
          %s241 = smul.addr %s237, 128
          %s242 = scalar_lea.hbm %s2, %s241
          %s243 = sshll.u32 [#allocation7], 4
          %s244 = int_to_ptr.vmem [resolvable:$true] %s243
          %249 = dma.hbm_to_vmem [thread:$0]  %s242, 6144, %s244, [#allocation6], 128, 128, 8
        $region24: #{tpu_custom_call.1} parent=11 // pred_fallthru
          _
        // Predicated region
        $region25: #{tpu_custom_call.1} parent=11 // pred_check
          %p250 = pneg %p124
        $region26: #{tpu_custom_call.1} parent=11 // pred_check_branch
          %252 = sbr.rel (%p250) target = $region28
        $region27: #{tpu_custom_call.1} parent=11 // pred_region
          %s254 = ssub.s32 2048, 2048
          %255 = vsyncadd [#allocation9], %s254
          %s256 = sshll.u32 [#allocation8], 4
          %s257 = int_to_ptr.vmem [resolvable:$true] %s256
          %262 = dma.hbm_to_vmem [thread:$0]  %s3, 2048, %s257, [#allocation9], 128, 128, 8
        $region28: #{tpu_custom_call.1} parent=11 // pred_fallthru
          _
        // Predicated region
        $region29: #{tpu_custom_call.1} parent=11 // pred_check
          %p263 = pneg %p145
        $region30: #{tpu_custom_call.1} parent=11 // pred_check_branch
          %265 = sbr.rel (%p263) target = $region32
        $region31: #{tpu_custom_call.1} parent=11 // pred_region
          %s267 = ssub.s32 2048, 2048
          %268 = vsyncadd [#allocation9], %s267
          %s269 = sshll.u32 [#allocation10], 4
          %s270 = int_to_ptr.vmem [resolvable:$true] %s269
          %275 = dma.hbm_to_vmem [thread:$0]  %s4, 2048, %s270, [#allocation9], 128, 128, 8
        $region32: #{tpu_custom_call.1} parent=11 // pred_fallthru
          _
        // Predicated region
        $region33: #{tpu_custom_call.1} parent=11 // pred_check
          %p276 = pneg %p166
        $region34: #{tpu_custom_call.1} parent=11 // pred_check_branch
          %278 = sbr.rel (%p276) target = $region36
        $region35: #{tpu_custom_call.1} parent=11 // pred_region
          _
        $region36: #{tpu_custom_call.1} parent=11 // pred_fallthru
          _
      $region12: #{tpu_custom_call.1} parent=5 // pred_fallthru
        _
      %p279 = scmp.lt.s32.totalorder %s18, 2
      // Predicated region
      $region37: #{tpu_custom_call.1} parent=5 // pred_check
        %p280 = pneg %p279
      $region38: #{tpu_custom_call.1} parent=5 // pred_check_branch
        %282 = sbr.rel (%p280) target = $region40
      $region39: #{tpu_custom_call.1} parent=5 // pred_region
        _
      $region40: #{tpu_custom_call.1} parent=5 // pred_fallthru
        _
      %p283 = scmp.le.s32.totalorder 1, %s18
      %p284 = scmp.lt.s32.totalorder %s18, 3
      %p285 = pnand %p283, %p284
      %p286 = pneg %p285
      // Predicated region
      $region41: #{tpu_custom_call.1} parent=5 // pred_check
        _
      $region42: #{tpu_custom_call.1} parent=5 // pred_check_branch
        %288 = sbr.rel (%p285) target = $region44
      $region43: #{tpu_custom_call.1} parent=5 // pred_region
        %s289 = ssub.s32 %s18, 1
        // Predicated region
        $region45: #{tpu_custom_call.1} parent=43 // pred_check
          %p290 = pneg %p51
        $region46: #{tpu_custom_call.1} parent=43 // pred_check_branch
          %292 = sbr.rel (%p290) target = $region48
        $region47: #{tpu_custom_call.1} parent=43 // pred_region
          %293 = dma.done [#allocation3], 3328
        $region48: #{tpu_custom_call.1} parent=43 // pred_fallthru
          _
        // Predicated region
        $region49: #{tpu_custom_call.1} parent=43 // pred_check
          %p294 = pneg %p77
        $region50: #{tpu_custom_call.1} parent=43 // pred_check_branch
          %296 = sbr.rel (%p294) target = $region52
        $region51: #{tpu_custom_call.1} parent=43 // pred_region
          %297 = dma.done [#allocation6], 384
        $region52: #{tpu_custom_call.1} parent=43 // pred_fallthru
          _
        // Predicated region
        $region53: #{tpu_custom_call.1} parent=43 // pred_check
          %p298 = pneg %p103
        $region54: #{tpu_custom_call.1} parent=43 // pred_check_branch
          %300 = sbr.rel (%p298) target = $region56
        $region55: #{tpu_custom_call.1} parent=43 // pred_region
          %301 = dma.done [#allocation6], 6144
        $region56: #{tpu_custom_call.1} parent=43 // pred_fallthru
          _
        // Predicated region
        $region57: #{tpu_custom_call.1} parent=43 // pred_check
          %p302 = pneg %p124
        $region58: #{tpu_custom_call.1} parent=43 // pred_check_branch
          %304 = sbr.rel (%p302) target = $region60
        $region59: #{tpu_custom_call.1} parent=43 // pred_region
          %305 = dma.done [#allocation9], 2048
        $region60: #{tpu_custom_call.1} parent=43 // pred_fallthru
          _
        // Predicated region
        $region61: #{tpu_custom_call.1} parent=43 // pred_check
          %p306 = pneg %p145
        $region62: #{tpu_custom_call.1} parent=43 // pred_check_branch
          %308 = sbr.rel (%p306) target = $region64
        $region63: #{tpu_custom_call.1} parent=43 // pred_region
          %309 = dma.done [#allocation9], 2048
        $region64: #{tpu_custom_call.1} parent=43 // pred_fallthru
          _
        %p310 = pneg %p51
        %p311 = pneg %p48
        %p312 = pneg %p77
        %p313 = pneg %p74
        %p314 = pneg %p103
        %p315 = pneg %p100
        %p316 = pneg %p124
        %p317 = pneg %p121
        %p318 = pneg %p145
        %p319 = pneg %p142
        %p320 = pneg %p166
        %p321 = pneg %p163
        %p322 = pneg %p192
        %p323 = pneg %p189
        %s324 = sand.u32 %s179, 1
        %s325 = scalar_lea.sflag [#allocation4], %s324
        %s326 = sand.u32 %s179, 1
        %s327 = smul.addr %s326, 104
        %s328 = scalar_lea.vmem [#allocation11], %s327
        %s329 = smul.u32 3, %s28
        %s330 = smul.u32 48, %s28
        %s331 = smul.u32 13, %s27
        %s332 = smul.u32 %s27, 104
        %p333 = scmp.eq.s32.totalorder %s28, 0
        // Predicated region
        $region65: #{tpu_custom_call.1} parent=43 // pred_check
          %p334 = pneg %p333
        $region66: #{tpu_custom_call.1} parent=43 // pred_check_branch
          %336 = sbr.rel (%p334) target = $region68
        $region67: #{tpu_custom_call.1} parent=43 // pred_region
          %s337 = scalar_lea.vmem [#allocation2], %s332
          %v338 = vld [vmem:[%s337] sm:$0xff]
          %v339 = vld [vmem:[%s337 + $0x8] sm:$0xff]
          %v340 = vld [vmem:[%s337 + $0x10] sm:$0xff]
          %v341 = vld [vmem:[%s337 + $0x18] sm:$0xff]
          %v342 = vld [vmem:[%s337 + $0x20] sm:$0xff]
          %v343 = vld [vmem:[%s337 + $0x28] sm:$0xff]
          %v344 = vld [vmem:[%s337 + $0x30] sm:$0xff]
          %v345 = vld [vmem:[%s337 + $0x38] sm:$0xff]
          %v346 = vld [vmem:[%s337 + $0x40] sm:$0xff]
          %v347 = vld [vmem:[%s337 + $0x48] sm:$0xff]
          %v348 = vld [vmem:[%s337 + $0x50] sm:$0xff]
          %v349 = vld [vmem:[%s337 + $0x58] sm:$0xff]
          %v350 = vld [vmem:[%s337 + $0x60] sm:$0xff]
          %v351 = vmul.f32 %v338, 2.0
          %v352 = vmul.f32 %v339, 2.0
          %v353 = vmul.f32 %v340, 2.0
          %v354 = vmul.f32 %v341, 2.0
          %v355 = vmul.f32 %v342, 2.0
          %v356 = vmul.f32 %v343, 2.0
          %v357 = vmul.f32 %v344, 2.0
          %v358 = vmul.f32 %v345, 2.0
          %v359 = vmul.f32 %v346, 2.0
          %v360 = vmul.f32 %v347, 2.0
          %v361 = vmul.f32 %v348, 2.0
          %v362 = vmul.f32 %v349, 2.0
          %v363 = vmul.f32 %v350, 2.0
          %364 = vst [vmem:[%s328] sm:$0xff] %v351
          %365 = vst [vmem:[%s328 + $0x8] sm:$0xff] %v352
          %366 = vst [vmem:[%s328 + $0x10] sm:$0xff] %v353
          %367 = vst [vmem:[%s328 + $0x18] sm:$0xff] %v354
          %368 = vst [vmem:[%s328 + $0x20] sm:$0xff] %v355
          %369 = vst [vmem:[%s328 + $0x28] sm:$0xff] %v356
          %370 = vst [vmem:[%s328 + $0x30] sm:$0xff] %v357
          %371 = vst [vmem:[%s328 + $0x38] sm:$0xff] %v358
          %372 = vst [vmem:[%s328 + $0x40] sm:$0xff] %v359
          %373 = vst [vmem:[%s328 + $0x48] sm:$0xff] %v360
          %374 = vst [vmem:[%s328 + $0x50] sm:$0xff] %v361
          %375 = vst [vmem:[%s328 + $0x58] sm:$0xff] %v362
          %376 = vst [vmem:[%s328 + $0x60] sm:$0xff] %v363
        $region68: #{tpu_custom_call.1} parent=43 // pred_fallthru
          _
        %v377 = vld [vmem:[#allocation5] ss:$8 sm:$0x7]
        %s378 = scalar_lea.vmem [#allocation5], 1
        %v379 = vld [vmem:[%s378] ss:$8 sm:$0x7]
        %v380 = vlaneseq
        %v381 = vshrl.u32 %v380, 7
        %v382 = vadd.s32 %v381, 8
        %v383 = vadd.s32 %v381, 16
        %v384 = vadd.s32 %v381, 24
        %v385 = vadd.s32 %v381, 32
        %v386 = vadd.s32 %v381, 40
        %v387 = vadd.s32 %v381, 48
        %v388 = vadd.s32 %v381, 56
        %v389 = vadd.s32 %v381, 64
        %v390 = vadd.s32 %v381, 72
        %v391 = vadd.s32 %v381, 80
        %v392 = vadd.s32 %v381, 88
        %v393 = vadd.s32 %v381, 96
        %v394 = vadd.s32 %v381, 104
        %v395 = vadd.s32 %v381, 112
        %v396 = vadd.s32 %v381, 120
        %v397 = vadd.s32 %v381, 128
        %v398 = vadd.s32 %v381, 136
        %v399 = vadd.s32 %v381, 144
        %v400 = vadd.s32 %v381, 152
        %v401 = vadd.s32 %v381, 160
        %v402 = vadd.s32 %v381, 168
        %v403 = vadd.s32 %v381, 176
        %v404 = vadd.s32 %v381, 184
        %v405 = vadd.s32 %v381, 192
        %v406 = vadd.s32 %v381, 200
        %v407 = vlaneseq
        %v408 = vshrl.u32 %v407, 7
        %v409 = vsub.s32 0, %v408
        %v410 = vrot.slane %v379, %v409
        %v411 = vlaneseq
        %v412 = vshrl.u32 %v411, 7
        %v413 = vsub.s32 1, %v412
        %v414 = vrot.slane %v379, %v413
        %v415 = vlaneseq
        %v416 = vshrl.u32 %v415, 7
        %v417 = vsub.s32 2, %v416
        %v418 = vrot.slane %v379, %v417
        %vm419 = vcmp.eq.s32.totalorder %v381, %v410
        %vm420 = vcmp.eq.s32.totalorder %v381, %v414
        %vm421 = vcmp.eq.s32.totalorder %v381, %v418
        %vm422 = vcmp.eq.s32.totalorder %v382, %v410
        %vm423 = vcmp.eq.s32.totalorder %v382, %v414
        %vm424 = vcmp.eq.s32.totalorder %v382, %v418
        %vm425 = vcmp.eq.s32.totalorder %v383, %v410
        %vm426 = vcmp.eq.s32.totalorder %v383, %v414
        %vm427 = vcmp.eq.s32.totalorder %v383, %v418
        %vm428 = vcmp.eq.s32.totalorder %v384, %v410
        %vm429 = vcmp.eq.s32.totalorder %v384, %v414
        %vm430 = vcmp.eq.s32.totalorder %v384, %v418
        %vm431 = vcmp.eq.s32.totalorder %v385, %v410
        %vm432 = vcmp.eq.s32.totalorder %v385, %v414
        %vm433 = vcmp.eq.s32.totalorder %v385, %v418
        %vm434 = vcmp.eq.s32.totalorder %v386, %v410
        %vm435 = vcmp.eq.s32.totalorder %v386, %v414
        %vm436 = vcmp.eq.s32.totalorder %v386, %v418
        %vm437 = vcmp.eq.s32.totalorder %v387, %v410
        %vm438 = vcmp.eq.s32.totalorder %v387, %v414
        %vm439 = vcmp.eq.s32.totalorder %v387, %v418
        %vm440 = vcmp.eq.s32.totalorder %v388, %v410
        %vm441 = vcmp.eq.s32.totalorder %v388, %v414
        %vm442 = vcmp.eq.s32.totalorder %v388, %v418
        %vm443 = vcmp.eq.s32.totalorder %v389, %v410
        %vm444 = vcmp.eq.s32.totalorder %v389, %v414
        %vm445 = vcmp.eq.s32.totalorder %v389, %v418
        %vm446 = vcmp.eq.s32.totalorder %v390, %v410
        %vm447 = vcmp.eq.s32.totalorder %v390, %v414
        %vm448 = vcmp.eq.s32.totalorder %v390, %v418
        %vm449 = vcmp.eq.s32.totalorder %v391, %v410
        %vm450 = vcmp.eq.s32.totalorder %v391, %v414
        %vm451 = vcmp.eq.s32.totalorder %v391, %v418
        %vm452 = vcmp.eq.s32.totalorder %v392, %v410
        %vm453 = vcmp.eq.s32.totalorder %v392, %v414
        %vm454 = vcmp.eq.s32.totalorder %v392, %v418
        %vm455 = vcmp.eq.s32.totalorder %v393, %v410
        %vm456 = vcmp.eq.s32.totalorder %v393, %v414
        %vm457 = vcmp.eq.s32.totalorder %v393, %v418
        %vm458 = vcmp.eq.s32.totalorder %v394, %v410
        %vm459 = vcmp.eq.s32.totalorder %v394, %v414
        %vm460 = vcmp.eq.s32.totalorder %v394, %v418
        %vm461 = vcmp.eq.s32.totalorder %v395, %v410
        %vm462 = vcmp.eq.s32.totalorder %v395, %v414
        %vm463 = vcmp.eq.s32.totalorder %v395, %v418
        %vm464 = vcmp.eq.s32.totalorder %v396, %v410
        %vm465 = vcmp.eq.s32.totalorder %v396, %v414
        %vm466 = vcmp.eq.s32.totalorder %v396, %v418
        %vm467 = vcmp.eq.s32.totalorder %v397, %v410
        %vm468 = vcmp.eq.s32.totalorder %v397, %v414
        %vm469 = vcmp.eq.s32.totalorder %v397, %v418
        %vm470 = vcmp.eq.s32.totalorder %v398, %v410
        %vm471 = vcmp.eq.s32.totalorder %v398, %v414
        %vm472 = vcmp.eq.s32.totalorder %v398, %v418
        %vm473 = vcmp.eq.s32.totalorder %v399, %v410
        %vm474 = vcmp.eq.s32.totalorder %v399, %v414
        %vm475 = vcmp.eq.s32.totalorder %v399, %v418
        %vm476 = vcmp.eq.s32.totalorder %v400, %v410
        %vm477 = vcmp.eq.s32.totalorder %v400, %v414
        %vm478 = vcmp.eq.s32.totalorder %v400, %v418
        %vm479 = vcmp.eq.s32.totalorder %v401, %v410
        %vm480 = vcmp.eq.s32.totalorder %v401, %v414
        %vm481 = vcmp.eq.s32.totalorder %v401, %v418
        %vm482 = vcmp.eq.s32.totalorder %v402, %v410
        %vm483 = vcmp.eq.s32.totalorder %v402, %v414
        %vm484 = vcmp.eq.s32.totalorder %v402, %v418
        %vm485 = vcmp.eq.s32.totalorder %v403, %v410
        %vm486 = vcmp.eq.s32.totalorder %v403, %v414
        %vm487 = vcmp.eq.s32.totalorder %v403, %v418
        %vm488 = vcmp.eq.s32.totalorder %v404, %v410
        %vm489 = vcmp.eq.s32.totalorder %v404, %v414
        %vm490 = vcmp.eq.s32.totalorder %v404, %v418
        %vm491 = vcmp.eq.s32.totalorder %v405, %v410
        %vm492 = vcmp.eq.s32.totalorder %v405, %v414
        %vm493 = vcmp.eq.s32.totalorder %v405, %v418
        %vm494 = vcmp.eq.s32.totalorder %v406, %v410
        %vm495 = vcmp.eq.s32.totalorder %v406, %v414
        %vm496 = vcmp.eq.s32.totalorder %v406, %v418
        %v497 = vsel %vm419, 1, 0
        %v498 = vsel %vm420, 1, 0
        %v499 = vsel %vm421, 1, 0
        %v500 = vsel %vm422, 1, 0
        %v501 = vsel %vm423, 1, 0
        %v502 = vsel %vm424, 1, 0
        %v503 = vsel %vm425, 1, 0
        %v504 = vsel %vm426, 1, 0
        %v505 = vsel %vm427, 1, 0
        %v506 = vsel %vm428, 1, 0
        %v507 = vsel %vm429, 1, 0
        %v508 = vsel %vm430, 1, 0
        %v509 = vsel %vm431, 1, 0
        %v510 = vsel %vm432, 1, 0
        %v511 = vsel %vm433, 1, 0
        %v512 = vsel %vm434, 1, 0
        %v513 = vsel %vm435, 1, 0
        %v514 = vsel %vm436, 1, 0
        %v515 = vsel %vm437, 1, 0
        %v516 = vsel %vm438, 1, 0
        %v517 = vsel %vm439, 1, 0
        %v518 = vsel %vm440, 1, 0
        %v519 = vsel %vm441, 1, 0
        %v520 = vsel %vm442, 1, 0
        %v521 = vsel %vm443, 1, 0
        %v522 = vsel %vm444, 1, 0
        %v523 = vsel %vm445, 1, 0
        %v524 = vsel %vm446, 1, 0
        %v525 = vsel %vm447, 1, 0
        %v526 = vsel %vm448, 1, 0
        %v527 = vsel %vm449, 1, 0
        %v528 = vsel %vm450, 1, 0
        %v529 = vsel %vm451, 1, 0
        %v530 = vsel %vm452, 1, 0
        %v531 = vsel %vm453, 1, 0
        %v532 = vsel %vm454, 1, 0
        %v533 = vsel %vm455, 1, 0
        %v534 = vsel %vm456, 1, 0
        %v535 = vsel %vm457, 1, 0
        %v536 = vsel %vm458, 1, 0
        %v537 = vsel %vm459, 1, 0
        %v538 = vsel %vm460, 1, 0
        %v539 = vsel %vm461, 1, 0
        %v540 = vsel %vm462, 1, 0
        %v541 = vsel %vm463, 1, 0
        %v542 = vsel %vm464, 1, 0
        %v543 = vsel %vm465, 1, 0
        %v544 = vsel %vm466, 1, 0
        %v545 = vsel %vm467, 1, 0
        %v546 = vsel %vm468, 1, 0
        %v547 = vsel %vm469, 1, 0
        %v548 = vsel %vm470, 1, 0
        %v549 = vsel %vm471, 1, 0
        %v550 = vsel %vm472, 1, 0
        %v551 = vsel %vm473, 1, 0
        %v552 = vsel %vm474, 1, 0
        %v553 = vsel %vm475, 1, 0
        %v554 = vsel %vm476, 1, 0
        %v555 = vsel %vm477, 1, 0
        %v556 = vsel %vm478, 1, 0
        %v557 = vsel %vm479, 1, 0
        %v558 = vsel %vm480, 1, 0
        %v559 = vsel %vm481, 1, 0
        %v560 = vsel %vm482, 1, 0
        %v561 = vsel %vm483, 1, 0
        %v562 = vsel %vm484, 1, 0
        %v563 = vsel %vm485, 1, 0
        %v564 = vsel %vm486, 1, 0
        %v565 = vsel %vm487, 1, 0
        %v566 = vsel %vm488, 1, 0
        %v567 = vsel %vm489, 1, 0
        %v568 = vsel %vm490, 1, 0
        %v569 = vsel %vm491, 1, 0
        %v570 = vsel %vm492, 1, 0
        %v571 = vsel %vm493, 1, 0
        %v572 = vsel %vm494, 1, 0
        %v573 = vsel %vm495, 1, 0
        %v574 = vsel %vm496, 1, 0
        %v575 = vcvt.s32.f32 %v497
        %v576 = vcvt.s32.f32 %v498
        %v577 = vcvt.s32.f32 %v499
        %v578 = vcvt.s32.f32 %v500
        %v579 = vcvt.s32.f32 %v501
        %v580 = vcvt.s32.f32 %v502
        %v581 = vcvt.s32.f32 %v503
        %v582 = vcvt.s32.f32 %v504
        %v583 = vcvt.s32.f32 %v505
        %v584 = vcvt.s32.f32 %v506
        %v585 = vcvt.s32.f32 %v507
        %v586 = vcvt.s32.f32 %v508
        %v587 = vcvt.s32.f32 %v509
        %v588 = vcvt.s32.f32 %v510
        %v589 = vcvt.s32.f32 %v511
        %v590 = vcvt.s32.f32 %v512
        %v591 = vcvt.s32.f32 %v513
        %v592 = vcvt.s32.f32 %v514
        %v593 = vcvt.s32.f32 %v515
        %v594 = vcvt.s32.f32 %v516
        %v595 = vcvt.s32.f32 %v517
        %v596 = vcvt.s32.f32 %v518
        %v597 = vcvt.s32.f32 %v519
        %v598 = vcvt.s32.f32 %v520
        %v599 = vcvt.s32.f32 %v521
        %v600 = vcvt.s32.f32 %v522
        %v601 = vcvt.s32.f32 %v523
        %v602 = vcvt.s32.f32 %v524
        %v603 = vcvt.s32.f32 %v525
        %v604 = vcvt.s32.f32 %v526
        %v605 = vcvt.s32.f32 %v527
        %v606 = vcvt.s32.f32 %v528
        %v607 = vcvt.s32.f32 %v529
        %v608 = vcvt.s32.f32 %v530
        %v609 = vcvt.s32.f32 %v531
        %v610 = vcvt.s32.f32 %v532
        %v611 = vcvt.s32.f32 %v533
        %v612 = vcvt.s32.f32 %v534
        %v613 = vcvt.s32.f32 %v535
        %v614 = vcvt.s32.f32 %v536
        %v615 = vcvt.s32.f32 %v537
        %v616 = vcvt.s32.f32 %v538
        %v617 = vcvt.s32.f32 %v539
        %v618 = vcvt.s32.f32 %v540
        %v619 = vcvt.s32.f32 %v541
        %v620 = vcvt.s32.f32 %v542
        %v621 = vcvt.s32.f32 %v543
        %v622 = vcvt.s32.f32 %v544
        %v623 = vcvt.s32.f32 %v545
        %v624 = vcvt.s32.f32 %v546
        %v625 = vcvt.s32.f32 %v547
        %v626 = vcvt.s32.f32 %v548
        %v627 = vcvt.s32.f32 %v549
        %v628 = vcvt.s32.f32 %v550
        %v629 = vcvt.s32.f32 %v551
        %v630 = vcvt.s32.f32 %v552
        %v631 = vcvt.s32.f32 %v553
        %v632 = vcvt.s32.f32 %v554
        %v633 = vcvt.s32.f32 %v555
        %v634 = vcvt.s32.f32 %v556
        %v635 = vcvt.s32.f32 %v557
        %v636 = vcvt.s32.f32 %v558
        %v637 = vcvt.s32.f32 %v559
        %v638 = vcvt.s32.f32 %v560
        %v639 = vcvt.s32.f32 %v561
        %v640 = vcvt.s32.f32 %v562
        %v641 = vcvt.s32.f32 %v563
        %v642 = vcvt.s32.f32 %v564
        %v643 = vcvt.s32.f32 %v565
        %v644 = vcvt.s32.f32 %v566
        %v645 = vcvt.s32.f32 %v567
        %v646 = vcvt.s32.f32 %v568
        %v647 = vcvt.s32.f32 %v569
        %v648 = vcvt.s32.f32 %v570
        %v649 = vcvt.s32.f32 %v571
        %v650 = vcvt.s32.f32 %v572
        %v651 = vcvt.s32.f32 %v573
        %v652 = vcvt.s32.f32 %v574
        %v653 = vld [vmem:[#allocation2] sm:$0xff]
        %v654 = vld [vmem:[#allocation2 + $0x8] sm:$0xff]
        %v655 = vld [vmem:[#allocation2 + $0x10] sm:$0xff]
        %v656 = vld [vmem:[#allocation2 + $0x18] sm:$0xff]
        %v657 = vld [vmem:[#allocation2 + $0x20] sm:$0xff]
        %v658 = vld [vmem:[#allocation2 + $0x28] sm:$0xff]
        %v659 = vld [vmem:[#allocation2 + $0x30] sm:$0xff]
        %v660 = vld [vmem:[#allocation2 + $0x38] sm:$0xff]
        %v661 = vld [vmem:[#allocation2 + $0x40] sm:$0xff]
        %v662 = vld [vmem:[#allocation2 + $0x48] sm:$0xff]
        %v663 = vld [vmem:[#allocation2 + $0x50] sm:$0xff]
        %v664 = vld [vmem:[#allocation2 + $0x58] sm:$0xff]
        %v665 = vld [vmem:[#allocation2 + $0x60] sm:$0xff]
        %v666 = vld [vmem:[#allocation2 + $0x68] sm:$0xff]
        %v667 = vld [vmem:[#allocation2 + $0x70] sm:$0xff]
        %v668 = vld [vmem:[#allocation2 + $0x78] sm:$0xff]
        %v669 = vld [vmem:[#allocation2 + $0x80] sm:$0xff]
        %v670 = vld [vmem:[#allocation2 + $0x88] sm:$0xff]
        %v671 = vld [vmem:[#allocation2 + $0x90] sm:$0xff]
        %v672 = vld [vmem:[#allocation2 + $0x98] sm:$0xff]
        %v673 = vld [vmem:[#allocation2 + $0xa0] sm:$0xff]
        %v674 = vld [vmem:[#allocation2 + $0xa8] sm:$0xff]
        %v675 = vld [vmem:[#allocation2 + $0xb0] sm:$0xff]
        %v676 = vld [vmem:[#allocation2 + $0xb8] sm:$0xff]
        %v677 = vld [vmem:[#allocation2 + $0xc0] sm:$0xff]
        %v678 = vld [vmem:[#allocation2 + $0xc8] sm:$0xff]
        %v679 = vld [vmem:[#allocation7] sm:$0xff]
        %v680 = vld [vmem:[#allocation7 + $0x8] sm:$0xff]
        %v681 = vld [vmem:[#allocation7 + $0x10] sm:$0xff]
        %v682 = vld [vmem:[#allocation7 + $0x18] sm:$0xff]
        %v683 = vld [vmem:[#allocation7 + $0x20] sm:$0xff]
        %v684 = vld [vmem:[#allocation7 + $0x28] sm:$0xff]
        %v685 = vld [vmem:[#allocation7 + $0x30] sm:$0xff]
        %v686 = vld [vmem:[#allocation7 + $0x38] sm:$0xff]
        %v687 = vld [vmem:[#allocation7 + $0x40] sm:$0xff]
        %v688 = vld [vmem:[#allocation7 + $0x48] sm:$0xff]
        %v689 = vld [vmem:[#allocation7 + $0x50] sm:$0xff]
        %v690 = vld [vmem:[#allocation7 + $0x58] sm:$0xff]
        %v691 = vld [vmem:[#allocation7 + $0x60] sm:$0xff]
        %v692 = vld [vmem:[#allocation7 + $0x68] sm:$0xff]
        %v693 = vld [vmem:[#allocation7 + $0x70] sm:$0xff]
        %v694 = vld [vmem:[#allocation7 + $0x78] sm:$0xff]
        %v695 = vld [vmem:[#allocation7 + $0x80] sm:$0xff]
        %v696 = vld [vmem:[#allocation7 + $0x88] sm:$0xff]
        %v697 = vld [vmem:[#allocation7 + $0x90] sm:$0xff]
        %v698 = vld [vmem:[#allocation7 + $0x98] sm:$0xff]
        %v699 = vld [vmem:[#allocation7 + $0xa0] sm:$0xff]
        %v700 = vld [vmem:[#allocation7 + $0xa8] sm:$0xff]
        %v701 = vld [vmem:[#allocation7 + $0xb0] sm:$0xff]
        %v702 = vld [vmem:[#allocation7 + $0xb8] sm:$0xff]
        %v703 = vld [vmem:[#allocation7 + $0xc0] sm:$0xff]
        %v704 = vld [vmem:[#allocation7 + $0xc8] sm:$0xff]
        %v705 = vld [vmem:[#allocation7 + $0xd0] sm:$0xff]
        %v706 = vld [vmem:[#allocation7 + $0xd8] sm:$0xff]
        %v707 = vld [vmem:[#allocation7 + $0xe0] sm:$0xff]
        %v708 = vld [vmem:[#allocation7 + $0xe8] sm:$0xff]
        %v709 = vld [vmem:[#allocation7 + $0xf0] sm:$0xff]
        %v710 = vld [vmem:[#allocation7 + $0xf8] sm:$0xff]
        %v711 = vld [vmem:[#allocation7 + $0x100] sm:$0xff]
        %v712 = vld [vmem:[#allocation7 + $0x108] sm:$0xff]
        %v713 = vld [vmem:[#allocation7 + $0x110] sm:$0xff]
        %v714 = vld [vmem:[#allocation7 + $0x118] sm:$0xff]
        %v715 = vld [vmem:[#allocation7 + $0x120] sm:$0xff]
        %v716 = vld [vmem:[#allocation7 + $0x128] sm:$0xff]
        %v717 = vld [vmem:[#allocation7 + $0x130] sm:$0xff]
        %v718 = vld [vmem:[#allocation7 + $0x138] sm:$0xff]
        %v719 = vld [vmem:[#allocation7 + $0x140] sm:$0xff]
        %v720 = vld [vmem:[#allocation7 + $0x148] sm:$0xff]
        %v721 = vld [vmem:[#allocation7 + $0x150] sm:$0xff]
        %v722 = vld [vmem:[#allocation7 + $0x158] sm:$0xff]
        %v723 = vld [vmem:[#allocation7 + $0x160] sm:$0xff]
        %v724 = vld [vmem:[#allocation7 + $0x168] sm:$0xff]
        %v725 = vld [vmem:[#allocation7 + $0x170] sm:$0xff]
        %v726 = vld [vmem:[#allocation7 + $0x178] sm:$0xff]
        %727 = vxpose.xlu0.b32.start [1/16] %v575, 128
        %728 = vxpose.xlu0.b32.cont [2/16] %v578, 128
        %729 = vxpose.xlu0.b32.cont [3/16] %v581, 128
        %730 = vxpose.xlu0.b32.cont [4/16] %v584, 128
        %731 = vxpose.xlu0.b32.cont [5/16] %v587, 128
        %732 = vxpose.xlu0.b32.cont [6/16] %v590, 128
        %733 = vxpose.xlu0.b32.cont [7/16] %v593, 128
        %734 = vxpose.xlu0.b32.cont [8/16] %v596, 128
        %735 = vxpose.xlu0.b32.cont [9/16] %v599, 128
        %736 = vxpose.xlu0.b32.cont [10/16] %v602, 128
        %737 = vxpose.xlu0.b32.cont [11/16] %v605, 128
        %738 = vxpose.xlu0.b32.cont [12/16] %v608, 128
        %739 = vxpose.xlu0.b32.cont [13/16] %v611, 128
        %740 = vxpose.xlu0.b32.cont [14/16] %v614, 128
        %741 = vxpose.xlu0.b32.cont [15/16] %v617, 128
        %742 = vxpose.xlu0.b32.end [16/16] %v620, 128
        %v743 = vpop.trf.xlu0
        %v744 = vpop.trf.xlu0
        %v745 = vpop.trf.xlu0
        %v746 = vpop.trf.xlu0
        %v747 = vpop.trf.xlu0
        %v748 = vpop.trf.xlu0
        %v749 = vpop.trf.xlu0
        %v750 = vpop.trf.xlu0
        %v751 = vpop.trf.xlu0
        %v752 = vpop.trf.xlu0
        %v753 = vpop.trf.xlu0
        %v754 = vpop.trf.xlu0
        %v755 = vpop.trf.xlu0
        %v756 = vpop.trf.xlu0
        %v757 = vpop.trf.xlu0
        %v758 = vpop.trf.xlu0
        %759 = vxpose.xlu0.b32.start [1/16] %v576, 128
        %760 = vxpose.xlu0.b32.cont [2/16] %v579, 128
        %761 = vxpose.xlu0.b32.cont [3/16] %v582, 128
        %762 = vxpose.xlu0.b32.cont [4/16] %v585, 128
        %763 = vxpose.xlu0.b32.cont [5/16] %v588, 128
        %764 = vxpose.xlu0.b32.cont [6/16] %v591, 128
        %765 = vxpose.xlu0.b32.cont [7/16] %v594, 128
        %766 = vxpose.xlu0.b32.cont [8/16] %v597, 128
        %767 = vxpose.xlu0.b32.cont [9/16] %v600, 128
        %768 = vxpose.xlu0.b32.cont [10/16] %v603, 128
        %769 = vxpose.xlu0.b32.cont [11/16] %v606, 128
        %770 = vxpose.xlu0.b32.cont [12/16] %v609, 128
        %771 = vxpose.xlu0.b32.cont [13/16] %v612, 128
        %772 = vxpose.xlu0.b32.cont [14/16] %v615, 128
        %773 = vxpose.xlu0.b32.cont [15/16] %v618, 128
        %774 = vxpose.xlu0.b32.end [16/16] %v621, 128
        %v775 = vpop.trf.xlu0
        %v776 = vpop.trf.xlu0
        %v777 = vpop.trf.xlu0
        %v778 = vpop.trf.xlu0
        %v779 = vpop.trf.xlu0
        %v780 = vpop.trf.xlu0
        %v781 = vpop.trf.xlu0
        %v782 = vpop.trf.xlu0
        %v783 = vpop.trf.xlu0
        %v784 = vpop.trf.xlu0
        %v785 = vpop.trf.xlu0
        %v786 = vpop.trf.xlu0
        %v787 = vpop.trf.xlu0
        %v788 = vpop.trf.xlu0
        %v789 = vpop.trf.xlu0
        %v790 = vpop.trf.xlu0
        %791 = vxpose.xlu0.b32.start [1/16] %v577, 128
        %792 = vxpose.xlu0.b32.cont [2/16] %v580, 128
        %793 = vxpose.xlu0.b32.cont [3/16] %v583, 128
        %794 = vxpose.xlu0.b32.cont [4/16] %v586, 128
        %795 = vxpose.xlu0.b32.cont [5/16] %v589, 128
        %796 = vxpose.xlu0.b32.cont [6/16] %v592, 128
        %797 = vxpose.xlu0.b32.cont [7/16] %v595, 128
        %798 = vxpose.xlu0.b32.cont [8/16] %v598, 128
        %799 = vxpose.xlu0.b32.cont [9/16] %v601, 128
        %800 = vxpose.xlu0.b32.cont [10/16] %v604, 128
        %801 = vxpose.xlu0.b32.cont [11/16] %v607, 128
        %802 = vxpose.xlu0.b32.cont [12/16] %v610, 128
        %803 = vxpose.xlu0.b32.cont [13/16] %v613, 128
        %804 = vxpose.xlu0.b32.cont [14/16] %v616, 128
        %805 = vxpose.xlu0.b32.cont [15/16] %v619, 128
        %806 = vxpose.xlu0.b32.end [16/16] %v622, 128
        %v807 = vpop.trf.xlu0
        %v808 = vpop.trf.xlu0
        %v809 = vpop.trf.xlu0
        %v810 = vpop.trf.xlu0
        %v811 = vpop.trf.xlu0
        %v812 = vpop.trf.xlu0
        %v813 = vpop.trf.xlu0
        %v814 = vpop.trf.xlu0
        %v815 = vpop.trf.xlu0
        %v816 = vpop.trf.xlu0
        %v817 = vpop.trf.xlu0
        %v818 = vpop.trf.xlu0
        %v819 = vpop.trf.xlu0
        %v820 = vpop.trf.xlu0
        %v821 = vpop.trf.xlu0
        %v822 = vpop.trf.xlu0
        %823 = vxpose.xlu0.b32.start [1/16] %v623, 128
        %824 = vxpose.xlu0.b32.cont [2/16] %v626, 128
        %825 = vxpose.xlu0.b32.cont [3/16] %v629, 128
        %826 = vxpose.xlu0.b32.cont [4/16] %v632, 128
        %827 = vxpose.xlu0.b32.cont [5/16] %v635, 128
        %828 = vxpose.xlu0.b32.cont [6/16] %v638, 128
        %829 = vxpose.xlu0.b32.cont [7/16] %v641, 128
        %830 = vxpose.xlu0.b32.cont [8/16] %v644, 128
        %831 = vxpose.xlu0.b32.cont [9/16] %v647, 128
        %832 = vxpose.xlu0.b32.cont [10/16] %v650, 128
        %833 = vxpose.xlu0.b32.cont [11/16] 0.0, 128
        %834 = vxpose.xlu0.b32.cont [12/16] 0.0, 128
        %835 = vxpose.xlu0.b32.cont [13/16] 0.0, 128
        %836 = vxpose.xlu0.b32.cont [14/16] 0.0, 128
        %837 = vxpose.xlu0.b32.cont [15/16] 0.0, 128
        %838 = vxpose.xlu0.b32.end [16/16] 0.0, 128
        %v839 = vpop.trf.xlu0
        %v840 = vpop.trf.xlu0
        %v841 = vpop.trf.xlu0
        %v842 = vpop.trf.xlu0
        %v843 = vpop.trf.xlu0
        %v844 = vpop.trf.xlu0
        %v845 = vpop.trf.xlu0
        %v846 = vpop.trf.xlu0
        %v847 = vpop.trf.xlu0
        %v848 = vpop.trf.xlu0
        %v849 = vpop.trf.xlu0
        %v850 = vpop.trf.xlu0
        %v851 = vpop.trf.xlu0
        %v852 = vpop.trf.xlu0
        %v853 = vpop.trf.xlu0
        %v854 = vpop.trf.xlu0
        %855 = vxpose.xlu0.b32.start [1/16] %v624, 128
        %856 = vxpose.xlu0.b32.cont [2/16] %v627, 128
        %857 = vxpose.xlu0.b32.cont [3/16] %v630, 128
        %858 = vxpose.xlu0.b32.cont [4/16] %v633, 128
        %859 = vxpose.xlu0.b32.cont [5/16] %v636, 128
        %860 = vxpose.xlu0.b32.cont [6/16] %v639, 128
        %861 = vxpose.xlu0.b32.cont [7/16] %v642, 128
        %862 = vxpose.xlu0.b32.cont [8/16] %v645, 128
        %863 = vxpose.xlu0.b32.cont [9/16] %v648, 128
        %864 = vxpose.xlu0.b32.cont [10/16] %v651, 128
        %865 = vxpose.xlu0.b32.cont [11/16] 0.0, 128
        %866 = vxpose.xlu0.b32.cont [12/16] 0.0, 128
        %867 = vxpose.xlu0.b32.cont [13/16] 0.0, 128
        %868 = vxpose.xlu0.b32.cont [14/16] 0.0, 128
        %869 = vxpose.xlu0.b32.cont [15/16] 0.0, 128
        %870 = vxpose.xlu0.b32.end [16/16] 0.0, 128
        %v871 = vpop.trf.xlu0
        %v872 = vpop.trf.xlu0
        %v873 = vpop.trf.xlu0
        %v874 = vpop.trf.xlu0
        %v875 = vpop.trf.xlu0
        %v876 = vpop.trf.xlu0
        %v877 = vpop.trf.xlu0
        %v878 = vpop.trf.xlu0
        %v879 = vpop.trf.xlu0
        %v880 = vpop.trf.xlu0
        %v881 = vpop.trf.xlu0
        %v882 = vpop.trf.xlu0
        %v883 = vpop.trf.xlu0
        %v884 = vpop.trf.xlu0
        %v885 = vpop.trf.xlu0
        %v886 = vpop.trf.xlu0
        %887 = vxpose.xlu0.b32.start [1/16] %v625, 128
        %888 = vxpose.xlu0.b32.cont [2/16] %v628, 128
        %889 = vxpose.xlu0.b32.cont [3/16] %v631, 128
        %890 = vxpose.xlu0.b32.cont [4/16] %v634, 128
        %891 = vxpose.xlu0.b32.cont [5/16] %v637, 128
        %892 = vxpose.xlu0.b32.cont [6/16] %v640, 128
        %893 = vxpose.xlu0.b32.cont [7/16] %v643, 128
        %894 = vxpose.xlu0.b32.cont [8/16] %v646, 128
        %895 = vxpose.xlu0.b32.cont [9/16] %v649, 128
        %896 = vxpose.xlu0.b32.cont [10/16] %v652, 128
        %897 = vxpose.xlu0.b32.cont [11/16] 0.0, 128
        %898 = vxpose.xlu0.b32.cont [12/16] 0.0, 128
        %899 = vxpose.xlu0.b32.cont [13/16] 0.0, 128
        %900 = vxpose.xlu0.b32.cont [14/16] 0.0, 128
        %901 = vxpose.xlu0.b32.cont [15/16] 0.0, 128
        %902 = vxpose.xlu0.b32.end [16/16] 0.0, 128
        %v903 = vpop.trf.xlu0
        %v904 = vpop.trf.xlu0
        %v905 = vpop.trf.xlu0
        %v906 = vpop.trf.xlu0
        %v907 = vpop.trf.xlu0
        %v908 = vpop.trf.xlu0
        %v909 = vpop.trf.xlu0
        %v910 = vpop.trf.xlu0
        %v911 = vpop.trf.xlu0
        %v912 = vpop.trf.xlu0
        %v913 = vpop.trf.xlu0
        %v914 = vpop.trf.xlu0
        %v915 = vpop.trf.xlu0
        %v916 = vpop.trf.xlu0
        %v917 = vpop.trf.xlu0
        %v918 = vpop.trf.xlu0
        %vm919 = vcmask 654336
        %v921 = vsel %vm919, %v839, 0
        %v924 = vsel %vm919, %v840, 0
        %v927 = vsel %vm919, %v841, 0
        %v930 = vsel %vm919, %v842, 0
        %v933 = vsel %vm919, %v843, 0
        %v936 = vsel %vm919, %v844, 0
        %v939 = vsel %vm919, %v845, 0
        %v942 = vsel %vm919, %v846, 0
        %v945 = vsel %vm919, %v847, 0
        %v948 = vsel %vm919, %v848, 0
        %v951 = vsel %vm919, %v849, 0
        %v954 = vsel %vm919, %v850, 0
        %v957 = vsel %vm919, %v851, 0
        %v960 = vsel %vm919, %v852, 0
        %v963 = vsel %vm919, %v853, 0
        %v966 = vsel %vm919, %v854, 0
        %v969 = vsel %vm919, %v871, 0
        %v972 = vsel %vm919, %v872, 0
        %v975 = vsel %vm919, %v873, 0
        %v978 = vsel %vm919, %v874, 0
        %v981 = vsel %vm919, %v875, 0
        %v984 = vsel %vm919, %v876, 0
        %v987 = vsel %vm919, %v877, 0
        %v990 = vsel %vm919, %v878, 0
        %v993 = vsel %vm919, %v879, 0
        %v996 = vsel %vm919, %v880, 0
        %v999 = vsel %vm919, %v881, 0
        %v1002 = vsel %vm919, %v882, 0
        %v1005 = vsel %vm919, %v883, 0
        %v1008 = vsel %vm919, %v884, 0
        %v1011 = vsel %vm919, %v885, 0
        %v1014 = vsel %vm919, %v886, 0
        %v1017 = vsel %vm919, %v903, 0
        %v1020 = vsel %vm919, %v904, 0
        %v1023 = vsel %vm919, %v905, 0
        %v1026 = vsel %vm919, %v906, 0
        %v1029 = vsel %vm919, %v907, 0
        %v1032 = vsel %vm919, %v908, 0
        %v1035 = vsel %vm919, %v909, 0
        %v1038 = vsel %vm919, %v910, 0
        %v1041 = vsel %vm919, %v911, 0
        %v1044 = vsel %vm919, %v912, 0
        %v1047 = vsel %vm919, %v913, 0
        %v1050 = vsel %vm919, %v914, 0
        %v1053 = vsel %vm919, %v915, 0
        %v1056 = vsel %vm919, %v916, 0
        %v1059 = vsel %vm919, %v917, 0
        %v1062 = vsel %vm919, %v918, 0
        %1064 = vmatprep.subr.mxu0 0.0
        %1065 = vmatpush1.msra.mxu0 %v653
        %1066 = vmatprep.subr.mxu0 0.0
        %1067 = vmatpush1.msra.mxu0 %v654
        %1068 = vmatprep.subr.mxu0 0.0
        %1069 = vmatpush1.msra.mxu0 %v655
        %1070 = vmatprep.subr.mxu0 0.0
        %1071 = vmatpush1.msra.mxu0 %v656
        %1072 = vmatprep.subr.mxu0 0.0
        %1073 = vmatpush1.msra.mxu0 %v657
        %1074 = vmatprep.subr.mxu0 0.0
        %1075 = vmatpush1.msra.mxu0 %v658
        %1076 = vmatprep.subr.mxu0 0.0
        %1077 = vmatpush1.msra.mxu0 %v659
        %1078 = vmatprep.subr.mxu0 0.0
        %1079 = vmatpush1.msra.mxu0 %v660
        %1080 = vmatprep.subr.mxu0 0.0
        %1081 = vmatpush1.msra.mxu0 %v661
        %1082 = vmatprep.subr.mxu0 0.0
        %1083 = vmatpush1.msra.mxu0 %v662
        %1084 = vmatprep.subr.mxu0 0.0
        %1085 = vmatpush1.msra.mxu0 %v663
        %1086 = vmatprep.subr.mxu0 0.0
        %1087 = vmatpush1.msra.mxu0 %v664
        %1088 = vmatprep.subr.mxu0 0.0
        %1089 = vmatpush1.msra.mxu0 %v665
        %1090 = vmatprep.subr.mxu0 0.0
        %1091 = vmatpush1.msra.mxu0 %v666
        %1092 = vmatprep.subr.mxu0 0.0
        %1093 = vmatpush1.msra.mxu0 %v667
        %1094 = vmatprep.subr.mxu0 0.0
        %1095 = vmatpush1.msra.mxu0 %v668
        %1096 = vmatprep.subr.mxu0 0.0
        %1097 = vmatpush1.msra.mxu0 %v669
        %1098 = vmatprep.subr.mxu0 0.0
        %1099 = vmatpush1.msra.mxu0 %v670
        %1100 = vmatprep.subr.mxu0 0.0
        %1101 = vmatpush1.msra.mxu0 %v671
        %1102 = vmatprep.subr.mxu0 0.0
        %1103 = vmatpush1.msra.mxu0 %v672
        %1104 = vmatprep.subr.mxu0 0.0
        %1105 = vmatpush1.msra.mxu0 %v673
        %1106 = vmatprep.subr.mxu0 0.0
        %1107 = vmatpush1.msra.mxu0 %v674
        %1108 = vmatprep.subr.mxu0 0.0
        %1109 = vmatpush1.msra.mxu0 %v675
        %1110 = vmatprep.subr.mxu0 0.0
        %1111 = vmatpush1.msra.mxu0 %v676
        %1112 = vmatprep.subr.mxu0 0.0
        %1113 = vmatpush1.msra.mxu0 %v677
        %1114 = vmatprep.subr.mxu0 0.0
        %1115 = vmatpush1.msra.mxu0 %v678
        %1116 = vmatprep.subr.mxu0 0.0
        %1117 = vmatpush1.msra.mxu0 0.0
        %1118 = vmatprep.subr.mxu0 0.0
        %1119 = vmatpush1.msra.mxu0 0.0
        %1120 = vmatprep.subr.mxu0 0.0
        %1121 = vmatpush1.msra.mxu0 0.0
        %1122 = vmatprep.subr.mxu0 0.0
        %1123 = vmatpush1.msra.mxu0 0.0
        %1124 = vmatprep.subr.mxu0 0.0
        %1125 = vmatpush1.msra.mxu0 0.0
        %1126 = vmatprep.subr.mxu0 0.0
        %1127 = vmatpush1.msra.mxu0 0.0
        %1128 = vmatprep.mubr.f32.mxu0 %v921
        %1129 = vmatmul.mubr.f32.gmra.mrb[0].mxu0 %v743
        %v1130 = vpop.f32.mrb[0].mxu0
        %v1131 = vadd.f32 %v679, %v1130
        %v1132 = vpop.f32.mrb[0].mxu0
        %1133 = vmatprep.mubr.f32.mxu0 %v924
        %1134 = vmatmul.mubr.f32.gmra.mrb[0].mxu0 %v744
        %v1135 = vpop.f32.mrb[0].mxu0
        %v1136 = vadd.f32 %v680, %v1135
        %v1137 = vpop.f32.mrb[0].mxu0
        %1138 = vmatprep.mubr.f32.mxu0 %v927
        %1139 = vmatmul.mubr.f32.gmra.mrb[0].mxu0 %v745
        %v1140 = vpop.f32.mrb[0].mxu0
        %v1141 = vadd.f32 %v681, %v1140
        %v1142 = vpop.f32.mrb[0].mxu0
        %1143 = vmatprep.mubr.f32.mxu0 %v930
        %1144 = vmatmul.mubr.f32.gmra.mrb[0].mxu0 %v746
        %v1145 = vpop.f32.mrb[0].mxu0
        %v1146 = vadd.f32 %v682, %v1145
        %v1147 = vpop.f32.mrb[0].mxu0
        %1148 = vmatprep.mubr.f32.mxu0 %v933
        %1149 = vmatmul.mubr.f32.gmra.mrb[0].mxu0 %v747
        %v1150 = vpop.f32.mrb[0].mxu0
        %v1151 = vadd.f32 %v683, %v1150
        %v1152 = vpop.f32.mrb[0].mxu0
        %1153 = vmatprep.mubr.f32.mxu0 %v936
        %1154 = vmatmul.mubr.f32.gmra.mrb[0].mxu0 %v748
        %v1155 = vpop.f32.mrb[0].mxu0
        %v1156 = vadd.f32 %v684, %v1155
        %v1157 = vpop.f32.mrb[0].mxu0
        %1158 = vmatprep.mubr.f32.mxu0 %v939
        %1159 = vmatmul.mubr.f32.gmra.mrb[0].mxu0 %v749
        %v1160 = vpop.f32.mrb[0].mxu0
        %v1161 = vadd.f32 %v685, %v1160
        %v1162 = vpop.f32.mrb[0].mxu0
        %1163 = vmatprep.mubr.f32.mxu0 %v942
        %1164 = vmatmul.mubr.f32.gmra.mrb[0].mxu0 %v750
        %v1165 = vpop.f32.mrb[0].mxu0
        %v1166 = vadd.f32 %v686, %v1165
        %v1167 = vpop.f32.mrb[0].mxu0
        %1168 = vmatprep.mubr.f32.mxu0 %v945
        %1169 = vmatmul.mubr.f32.gmra.mrb[0].mxu0 %v751
        %v1170 = vpop.f32.mrb[0].mxu0
        %v1171 = vadd.f32 %v687, %v1170
        %v1172 = vpop.f32.mrb[0].mxu0
        %1173 = vmatprep.mubr.f32.mxu0 %v948
        %1174 = vmatmul.mubr.f32.gmra.mrb[0].mxu0 %v752
        %v1175 = vpop.f32.mrb[0].mxu0
        %v1176 = vadd.f32 %v688, %v1175
        %v1177 = vpop.f32.mrb[0].mxu0
        %1178 = vmatprep.mubr.f32.mxu0 %v951
        %1179 = vmatmul.mubr.f32.gmra.mrb[0].mxu0 %v753
        %v1180 = vpop.f32.mrb[0].mxu0
        %v1181 = vadd.f32 %v689, %v1180
        %v1182 = vpop.f32.mrb[0].mxu0
        %1183 = vmatprep.mubr.f32.mxu0 %v954
        %1184 = vmatmul.mubr.f32.gmra.mrb[0].mxu0 %v754
        %v1185 = vpop.f32.mrb[0].mxu0
        %v1186 = vadd.f32 %v690, %v1185
        %v1187 = vpop.f32.mrb[0].mxu0
        %1188 = vmatprep.mubr.f32.mxu0 %v957
        %1189 = vmatmul.mubr.f32.gmra.mrb[0].mxu0 %v755
        %v1190 = vpop.f32.mrb[0].mxu0
        %v1191 = vadd.f32 %v691, %v1190
        %v1192 = vpop.f32.mrb[0].mxu0
        %1193 = vmatprep.mubr.f32.mxu0 %v960
        %1194 = vmatmul.mubr.f32.gmra.mrb[0].mxu0 %v756
        %v1195 = vpop.f32.mrb[0].mxu0
        %v1196 = vadd.f32 %v692, %v1195
        %v1197 = vpop.f32.mrb[0].mxu0
        %1198 = vmatprep.mubr.f32.mxu0 %v963
        %1199 = vmatmul.mubr.f32.gmra.mrb[0].mxu0 %v757
        %v1200 = vpop.f32.mrb[0].mxu0
        %v1201 = vadd.f32 %v693, %v1200
        %v1202 = vpop.f32.mrb[0].mxu0
        %1203 = vmatprep.mubr.f32.mxu0 %v966
        %1204 = vmatmul.mubr.f32.gmra.mrb[0].mxu0 %v758
        %v1205 = vpop.f32.mrb[0].mxu0
        %v1206 = vadd.f32 %v694, %v1205
        %v1207 = vpop.f32.mrb[0].mxu0
        %1208 = vmatprep.mubr.f32.mxu0 %v969
        %1209 = vmatmul.mubr.f32.gmra.mrb[0].mxu0 %v775
        %v1210 = vpop.f32.mrb[0].mxu0
        %v1211 = vadd.f32 %v695, %v1210
        %v1212 = vpop.f32.mrb[0].mxu0
        %1213 = vmatprep.mubr.f32.mxu0 %v972
        %1214 = vmatmul.mubr.f32.gmra.mrb[0].mxu0 %v776
        %v1215 = vpop.f32.mrb[0].mxu0
        %v1216 = vadd.f32 %v696, %v1215
        %v1217 = vpop.f32.mrb[0].mxu0
        %1218 = vmatprep.mubr.f32.mxu0 %v975
        %1219 = vmatmul.mubr.f32.gmra.mrb[0].mxu0 %v777
        %v1220 = vpop.f32.mrb[0].mxu0
        %v1221 = vadd.f32 %v697, %v1220
        %v1222 = vpop.f32.mrb[0].mxu0
        %1223 = vmatprep.mubr.f32.mxu0 %v978
        %1224 = vmatmul.mubr.f32.gmra.mrb[0].mxu0 %v778
        %v1225 = vpop.f32.mrb[0].mxu0
        %v1226 = vadd.f32 %v698, %v1225
        %v1227 = vpop.f32.mrb[0].mxu0
        %1228 = vmatprep.mubr.f32.mxu0 %v981
        %1229 = vmatmul.mubr.f32.gmra.mrb[0].mxu0 %v779
        %v1230 = vpop.f32.mrb[0].mxu0
        %v1231 = vadd.f32 %v699, %v1230
        %v1232 = vpop.f32.mrb[0].mxu0
        %1233 = vmatprep.mubr.f32.mxu0 %v984
        %1234 = vmatmul.mubr.f32.gmra.mrb[0].mxu0 %v780
        %v1235 = vpop.f32.mrb[0].mxu0
        %v1236 = vadd.f32 %v700, %v1235
        %v1237 = vpop.f32.mrb[0].mxu0
        %1238 = vmatprep.mubr.f32.mxu0 %v987
        %1239 = vmatmul.mubr.f32.gmra.mrb[0].mxu0 %v781
        %v1240 = vpop.f32.mrb[0].mxu0
        %v1241 = vadd.f32 %v701, %v1240
        %v1242 = vpop.f32.mrb[0].mxu0
        %1243 = vmatprep.mubr.f32.mxu0 %v990
        %1244 = vmatmul.mubr.f32.gmra.mrb[0].mxu0 %v782
        %v1245 = vpop.f32.mrb[0].mxu0
        %v1246 = vadd.f32 %v702, %v1245
        %v1247 = vpop.f32.mrb[0].mxu0
        %1248 = vmatprep.mubr.f32.mxu0 %v993
        %1249 = vmatmul.mubr.f32.gmra.mrb[0].mxu0 %v783
        %v1250 = vpop.f32.mrb[0].mxu0
        %v1251 = vadd.f32 %v703, %v1250
        %v1252 = vpop.f32.mrb[0].mxu0
        %1253 = vmatprep.mubr.f32.mxu0 %v996
        %1254 = vmatmul.mubr.f32.gmra.mrb[0].mxu0 %v784
        %v1255 = vpop.f32.mrb[0].mxu0
        %v1256 = vadd.f32 %v704, %v1255
        %v1257 = vpop.f32.mrb[0].mxu0
        %1258 = vmatprep.mubr.f32.mxu0 %v999
        %1259 = vmatmul.mubr.f32.gmra.mrb[0].mxu0 %v785
        %v1260 = vpop.f32.mrb[0].mxu0
        %v1261 = vadd.f32 %v705, %v1260
        %v1262 = vpop.f32.mrb[0].mxu0
        %1263 = vmatprep.mubr.f32.mxu0 %v1002
        %1264 = vmatmul.mubr.f32.gmra.mrb[0].mxu0 %v786
        %v1265 = vpop.f32.mrb[0].mxu0
        %v1266 = vadd.f32 %v706, %v1265
        %v1267 = vpop.f32.mrb[0].mxu0
        %1268 = vmatprep.mubr.f32.mxu0 %v1005
        %1269 = vmatmul.mubr.f32.gmra.mrb[0].mxu0 %v787
        %v1270 = vpop.f32.mrb[0].mxu0
        %v1271 = vadd.f32 %v707, %v1270
        %v1272 = vpop.f32.mrb[0].mxu0
        %1273 = vmatprep.mubr.f32.mxu0 %v1008
        %1274 = vmatmul.mubr.f32.gmra.mrb[0].mxu0 %v788
        %v1275 = vpop.f32.mrb[0].mxu0
        %v1276 = vadd.f32 %v708, %v1275
        %v1277 = vpop.f32.mrb[0].mxu0
        %1278 = vmatprep.mubr.f32.mxu0 %v1011
        %1279 = vmatmul.mubr.f32.gmra.mrb[0].mxu0 %v789
        %v1280 = vpop.f32.mrb[0].mxu0
        %v1281 = vadd.f32 %v709, %v1280
        %v1282 = vpop.f32.mrb[0].mxu0
        %1283 = vmatprep.mubr.f32.mxu0 %v1014
        %1284 = vmatmul.mubr.f32.gmra.mrb[0].mxu0 %v790
        %v1285 = vpop.f32.mrb[0].mxu0
        %v1286 = vadd.f32 %v710, %v1285
        %v1287 = vpop.f32.mrb[0].mxu0
        %1288 = vmatprep.mubr.f32.mxu0 %v1017
        %1289 = vmatmul.mubr.f32.gmra.mrb[0].mxu0 %v807
        %v1290 = vpop.f32.mrb[0].mxu0
        %v1291 = vadd.f32 %v711, %v1290
        %v1292 = vpop.f32.mrb[0].mxu0
        %1293 = vmatprep.mubr.f32.mxu0 %v1020
        %1294 = vmatmul.mubr.f32.gmra.mrb[0].mxu0 %v808
        %v1295 = vpop.f32.mrb[0].mxu0
        %v1296 = vadd.f32 %v712, %v1295
        %v1297 = vpop.f32.mrb[0].mxu0
        %1298 = vmatprep.mubr.f32.mxu0 %v1023
        %1299 = vmatmul.mubr.f32.gmra.mrb[0].mxu0 %v809
        %v1300 = vpop.f32.mrb[0].mxu0
        %v1301 = vadd.f32 %v713, %v1300
        %v1302 = vpop.f32.mrb[0].mxu0
        %1303 = vmatprep.mubr.f32.mxu0 %v1026
        %1304 = vmatmul.mubr.f32.gmra.mrb[0].mxu0 %v810
        %v1305 = vpop.f32.mrb[0].mxu0
        %v1306 = vadd.f32 %v714, %v1305
        %v1307 = vpop.f32.mrb[0].mxu0
        %1308 = vmatprep.mubr.f32.mxu0 %v1029
        %1309 = vmatmul.mubr.f32.gmra.mrb[0].mxu0 %v811
        %v1310 = vpop.f32.mrb[0].mxu0
        %v1311 = vadd.f32 %v715, %v1310
        %v1312 = vpop.f32.mrb[0].mxu0
        %1313 = vmatprep.mubr.f32.mxu0 %v1032
        %1314 = vmatmul.mubr.f32.gmra.mrb[0].mxu0 %v812
        %v1315 = vpop.f32.mrb[0].mxu0
        %v1316 = vadd.f32 %v716, %v1315
        %v1317 = vpop.f32.mrb[0].mxu0
        %1318 = vmatprep.mubr.f32.mxu0 %v1035
        %1319 = vmatmul.mubr.f32.gmra.mrb[0].mxu0 %v813
        %v1320 = vpop.f32.mrb[0].mxu0
        %v1321 = vadd.f32 %v717, %v1320
        %v1322 = vpop.f32.mrb[0].mxu0
        %1323 = vmatprep.mubr.f32.mxu0 %v1038
        %1324 = vmatmul.mubr.f32.gmra.mrb[0].mxu0 %v814
        %v1325 = vpop.f32.mrb[0].mxu0
        %v1326 = vadd.f32 %v718, %v1325
        %v1327 = vpop.f32.mrb[0].mxu0
        %1328 = vmatprep.mubr.f32.mxu0 %v1041
        %1329 = vmatmul.mubr.f32.gmra.mrb[0].mxu0 %v815
        %v1330 = vpop.f32.mrb[0].mxu0
        %v1331 = vadd.f32 %v719, %v1330
        %v1332 = vpop.f32.mrb[0].mxu0
        %1333 = vmatprep.mubr.f32.mxu0 %v1044
        %1334 = vmatmul.mubr.f32.gmra.mrb[0].mxu0 %v816
        %v1335 = vpop.f32.mrb[0].mxu0
        %v1336 = vadd.f32 %v720, %v1335
        %v1337 = vpop.f32.mrb[0].mxu0
        %1338 = vmatprep.mubr.f32.mxu0 %v1047
        %1339 = vmatmul.mubr.f32.gmra.mrb[0].mxu0 %v817
        %v1340 = vpop.f32.mrb[0].mxu0
        %v1341 = vadd.f32 %v721, %v1340
        %v1342 = vpop.f32.mrb[0].mxu0
        %1343 = vmatprep.mubr.f32.mxu0 %v1050
        %1344 = vmatmul.mubr.f32.gmra.mrb[0].mxu0 %v818
        %v1345 = vpop.f32.mrb[0].mxu0
        %v1346 = vadd.f32 %v722, %v1345
        %v1347 = vpop.f32.mrb[0].mxu0
        %1348 = vmatprep.mubr.f32.mxu0 %v1053
        %1349 = vmatmul.mubr.f32.gmra.mrb[0].mxu0 %v819
        %v1350 = vpop.f32.mrb[0].mxu0
        %v1351 = vadd.f32 %v723, %v1350
        %v1352 = vpop.f32.mrb[0].mxu0
        %1353 = vmatprep.mubr.f32.mxu0 %v1056
        %1354 = vmatmul.mubr.f32.gmra.mrb[0].mxu0 %v820
        %v1355 = vpop.f32.mrb[0].mxu0
        %v1356 = vadd.f32 %v724, %v1355
        %v1357 = vpop.f32.mrb[0].mxu0
        %1358 = vmatprep.mubr.f32.mxu0 %v1059
        %1359 = vmatmul.mubr.f32.gmra.mrb[0].mxu0 %v821
        %v1360 = vpop.f32.mrb[0].mxu0
        %v1361 = vadd.f32 %v725, %v1360
        %v1362 = vpop.f32.mrb[0].mxu0
        %1363 = vmatprep.mubr.f32.mxu0 %v1062
        %1364 = vmatmul.mubr.f32.gmra.mrb[0].mxu0 %v822
        %v1365 = vpop.f32.mrb[0].mxu0
        %v1366 = vadd.f32 %v726, %v1365
        %v1367 = vpop.f32.mrb[0].mxu0
        %1368 = vdwg.mxu0
        %v1369 = vmax.f32 %v1131, 0.0
        %v1370 = vmax.f32 %v1136, 0.0
        %v1371 = vmax.f32 %v1141, 0.0
        %v1372 = vmax.f32 %v1146, 0.0
        %v1373 = vmax.f32 %v1151, 0.0
        %v1374 = vmax.f32 %v1156, 0.0
        %v1375 = vmax.f32 %v1161, 0.0
        %v1376 = vmax.f32 %v1166, 0.0
        %v1377 = vmax.f32 %v1171, 0.0
        %v1378 = vmax.f32 %v1176, 0.0
        %v1379 = vmax.f32 %v1181, 0.0
        %v1380 = vmax.f32 %v1186, 0.0
        %v1381 = vmax.f32 %v1191, 0.0
        %v1382 = vmax.f32 %v1196, 0.0
        %v1383 = vmax.f32 %v1201, 0.0
        %v1384 = vmax.f32 %v1206, 0.0
        %v1385 = vmax.f32 %v1211, 0.0
        %v1386 = vmax.f32 %v1216, 0.0
        %v1387 = vmax.f32 %v1221, 0.0
        %v1388 = vmax.f32 %v1226, 0.0
        %v1389 = vmax.f32 %v1231, 0.0
        %v1390 = vmax.f32 %v1236, 0.0
        %v1391 = vmax.f32 %v1241, 0.0
        %v1392 = vmax.f32 %v1246, 0.0
        %v1393 = vmax.f32 %v1251, 0.0
        %v1394 = vmax.f32 %v1256, 0.0
        %v1395 = vmax.f32 %v1261, 0.0
        %v1396 = vmax.f32 %v1266, 0.0
        %v1397 = vmax.f32 %v1271, 0.0
        %v1398 = vmax.f32 %v1276, 0.0
        %v1399 = vmax.f32 %v1281, 0.0
        %v1400 = vmax.f32 %v1286, 0.0
        %v1401 = vmax.f32 %v1291, 0.0
        %v1402 = vmax.f32 %v1296, 0.0
        %v1403 = vmax.f32 %v1301, 0.0
        %v1404 = vmax.f32 %v1306, 0.0
        %v1405 = vmax.f32 %v1311, 0.0
        %v1406 = vmax.f32 %v1316, 0.0
        %v1407 = vmax.f32 %v1321, 0.0
        %v1408 = vmax.f32 %v1326, 0.0
        %v1409 = vmax.f32 %v1331, 0.0
        %v1410 = vmax.f32 %v1336, 0.0
        %v1411 = vmax.f32 %v1341, 0.0
        %v1412 = vmax.f32 %v1346, 0.0
        %v1413 = vmax.f32 %v1351, 0.0
        %v1414 = vmax.f32 %v1356, 0.0
        %v1415 = vmax.f32 %v1361, 0.0
        %v1416 = vmax.f32 %v1366, 0.0
        %v1417 = vstv %s332
        %v1418 = vadd.s32 %v1417, %v381
        %v1419 = vadd.s32 %v1417, %v382
        %v1420 = vadd.s32 %v1417, %v383
        %v1421 = vadd.s32 %v1417, %v384
        %v1422 = vadd.s32 %v1417, %v385
        %v1423 = vadd.s32 %v1417, %v386
        %v1424 = vadd.s32 %v1417, %v387
        %v1425 = vadd.s32 %v1417, %v388
        %v1426 = vadd.s32 %v1417, %v389
        %v1427 = vadd.s32 %v1417, %v390
        %v1428 = vadd.s32 %v1417, %v391
        %v1429 = vadd.s32 %v1417, %v392
        %v1430 = vadd.s32 %v1417, %v393
        %v1431 = vlaneseq
        %v1432 = vshrl.u32 %v1431, 7
        %v1433 = vsub.s32 0, %v1432
        %v1434 = vrot.slane %v377, %v1433
        %v1435 = vlaneseq
        %v1436 = vshrl.u32 %v1435, 7
        %v1437 = vsub.s32 1, %v1436
        %v1438 = vrot.slane %v377, %v1437
        %v1439 = vlaneseq
        %v1440 = vshrl.u32 %v1439, 7
        %v1441 = vsub.s32 2, %v1440
        %v1442 = vrot.slane %v377, %v1441
        %vm1443 = vcmp.eq.s32.totalorder %v1418, %v1434
        %vm1444 = vcmp.eq.s32.totalorder %v1418, %v1438
        %vm1445 = vcmp.eq.s32.totalorder %v1418, %v1442
        %vm1446 = vcmp.eq.s32.totalorder %v1419, %v1434
        %vm1447 = vcmp.eq.s32.totalorder %v1419, %v1438
        %vm1448 = vcmp.eq.s32.totalorder %v1419, %v1442
        %vm1449 = vcmp.eq.s32.totalorder %v1420, %v1434
        %vm1450 = vcmp.eq.s32.totalorder %v1420, %v1438
        %vm1451 = vcmp.eq.s32.totalorder %v1420, %v1442
        %vm1452 = vcmp.eq.s32.totalorder %v1421, %v1434
        %vm1453 = vcmp.eq.s32.totalorder %v1421, %v1438
        %vm1454 = vcmp.eq.s32.totalorder %v1421, %v1442
        %vm1455 = vcmp.eq.s32.totalorder %v1422, %v1434
        %vm1456 = vcmp.eq.s32.totalorder %v1422, %v1438
        %vm1457 = vcmp.eq.s32.totalorder %v1422, %v1442
        %vm1458 = vcmp.eq.s32.totalorder %v1423, %v1434
        %vm1459 = vcmp.eq.s32.totalorder %v1423, %v1438
        %vm1460 = vcmp.eq.s32.totalorder %v1423, %v1442
        %vm1461 = vcmp.eq.s32.totalorder %v1424, %v1434
        %vm1462 = vcmp.eq.s32.totalorder %v1424, %v1438
        %vm1463 = vcmp.eq.s32.totalorder %v1424, %v1442
        %vm1464 = vcmp.eq.s32.totalorder %v1425, %v1434
        %vm1465 = vcmp.eq.s32.totalorder %v1425, %v1438
        %vm1466 = vcmp.eq.s32.totalorder %v1425, %v1442
        %vm1467 = vcmp.eq.s32.totalorder %v1426, %v1434
        %vm1468 = vcmp.eq.s32.totalorder %v1426, %v1438
        %vm1469 = vcmp.eq.s32.totalorder %v1426, %v1442
        %vm1470 = vcmp.eq.s32.totalorder %v1427, %v1434
        %vm1471 = vcmp.eq.s32.totalorder %v1427, %v1438
        %vm1472 = vcmp.eq.s32.totalorder %v1427, %v1442
        %vm1473 = vcmp.eq.s32.totalorder %v1428, %v1434
        %vm1474 = vcmp.eq.s32.totalorder %v1428, %v1438
        %vm1475 = vcmp.eq.s32.totalorder %v1428, %v1442
        %vm1476 = vcmp.eq.s32.totalorder %v1429, %v1434
        %vm1477 = vcmp.eq.s32.totalorder %v1429, %v1438
        %vm1478 = vcmp.eq.s32.totalorder %v1429, %v1442
        %vm1479 = vcmp.eq.s32.totalorder %v1430, %v1434
        %vm1480 = vcmp.eq.s32.totalorder %v1430, %v1438
        %vm1481 = vcmp.eq.s32.totalorder %v1430, %v1442
        %v1482 = vsel %vm1443, 1, 0
        %v1483 = vsel %vm1444, 1, 0
        %v1484 = vsel %vm1445, 1, 0
        %v1485 = vsel %vm1446, 1, 0
        %v1486 = vsel %vm1447, 1, 0
        %v1487 = vsel %vm1448, 1, 0
        %v1488 = vsel %vm1449, 1, 0
        %v1489 = vsel %vm1450, 1, 0
        %v1490 = vsel %vm1451, 1, 0
        %v1491 = vsel %vm1452, 1, 0
        %v1492 = vsel %vm1453, 1, 0
        %v1493 = vsel %vm1454, 1, 0
        %v1494 = vsel %vm1455, 1, 0
        %v1495 = vsel %vm1456, 1, 0
        %v1496 = vsel %vm1457, 1, 0
        %v1497 = vsel %vm1458, 1, 0
        %v1498 = vsel %vm1459, 1, 0
        %v1499 = vsel %vm1460, 1, 0
        %v1500 = vsel %vm1461, 1, 0
        %v1501 = vsel %vm1462, 1, 0
        %v1502 = vsel %vm1463, 1, 0
        %v1503 = vsel %vm1464, 1, 0
        %v1504 = vsel %vm1465, 1, 0
        %v1505 = vsel %vm1466, 1, 0
        %v1506 = vsel %vm1467, 1, 0
        %v1507 = vsel %vm1468, 1, 0
        %v1508 = vsel %vm1469, 1, 0
        %v1509 = vsel %vm1470, 1, 0
        %v1510 = vsel %vm1471, 1, 0
        %v1511 = vsel %vm1472, 1, 0
        %v1512 = vsel %vm1473, 1, 0
        %v1513 = vsel %vm1474, 1, 0
        %v1514 = vsel %vm1475, 1, 0
        %v1515 = vsel %vm1476, 1, 0
        %v1516 = vsel %vm1477, 1, 0
        %v1517 = vsel %vm1478, 1, 0
        %v1518 = vsel %vm1479, 1, 0
        %v1519 = vsel %vm1480, 1, 0
        %v1520 = vsel %vm1481, 1, 0
        %v1521 = vcvt.s32.f32 %v1482
        %v1522 = vcvt.s32.f32 %v1483
        %v1523 = vcvt.s32.f32 %v1484
        %v1524 = vcvt.s32.f32 %v1485
        %v1525 = vcvt.s32.f32 %v1486
        %v1526 = vcvt.s32.f32 %v1487
        %v1527 = vcvt.s32.f32 %v1488
        %v1528 = vcvt.s32.f32 %v1489
        %v1529 = vcvt.s32.f32 %v1490
        %v1530 = vcvt.s32.f32 %v1491
        %v1531 = vcvt.s32.f32 %v1492
        %v1532 = vcvt.s32.f32 %v1493
        %v1533 = vcvt.s32.f32 %v1494
        %v1534 = vcvt.s32.f32 %v1495
        %v1535 = vcvt.s32.f32 %v1496
        %v1536 = vcvt.s32.f32 %v1497
        %v1537 = vcvt.s32.f32 %v1498
        %v1538 = vcvt.s32.f32 %v1499
        %v1539 = vcvt.s32.f32 %v1500
        %v1540 = vcvt.s32.f32 %v1501
        %v1541 = vcvt.s32.f32 %v1502
        %v1542 = vcvt.s32.f32 %v1503
        %v1543 = vcvt.s32.f32 %v1504
        %v1544 = vcvt.s32.f32 %v1505
        %v1545 = vcvt.s32.f32 %v1506
        %v1546 = vcvt.s32.f32 %v1507
        %v1547 = vcvt.s32.f32 %v1508
        %v1548 = vcvt.s32.f32 %v1509
        %v1549 = vcvt.s32.f32 %v1510
        %v1550 = vcvt.s32.f32 %v1511
        %v1551 = vcvt.s32.f32 %v1512
        %v1552 = vcvt.s32.f32 %v1513
        %v1553 = vcvt.s32.f32 %v1514
        %v1554 = vcvt.s32.f32 %v1515
        %v1555 = vcvt.s32.f32 %v1516
        %v1556 = vcvt.s32.f32 %v1517
        %v1557 = vcvt.s32.f32 %v1518
        %v1558 = vcvt.s32.f32 %v1519
        %v1559 = vcvt.s32.f32 %v1520
        %v1560 = vld [vmem:[%s328] sm:$0xff]
        %v1561 = vld [vmem:[%s328 + $0x8] sm:$0xff]
        %v1562 = vld [vmem:[%s328 + $0x10] sm:$0xff]
        %v1563 = vld [vmem:[%s328 + $0x18] sm:$0xff]
        %v1564 = vld [vmem:[%s328 + $0x20] sm:$0xff]
        %v1565 = vld [vmem:[%s328 + $0x28] sm:$0xff]
        %v1566 = vld [vmem:[%s328 + $0x30] sm:$0xff]
        %v1567 = vld [vmem:[%s328 + $0x38] sm:$0xff]
        %v1568 = vld [vmem:[%s328 + $0x40] sm:$0xff]
        %v1569 = vld [vmem:[%s328 + $0x48] sm:$0xff]
        %v1570 = vld [vmem:[%s328 + $0x50] sm:$0xff]
        %v1571 = vld [vmem:[%s328 + $0x58] sm:$0xff]
        %v1572 = vld [vmem:[%s328 + $0x60] sm:$0xff]
        %1573 = vmatprep.subr.mxu0 0.0
        %1574 = vmatpush1.msra.mxu0 %v1369
        %1575 = vmatprep.subr.mxu0 0.0
        %1576 = vmatpush1.msra.mxu0 %v1370
        %1577 = vmatprep.subr.mxu0 0.0
        %1578 = vmatpush1.msra.mxu0 %v1371
        %1579 = vmatprep.subr.mxu0 0.0
        %1580 = vmatpush1.msra.mxu0 %v1372
        %1581 = vmatprep.subr.mxu0 0.0
        %1582 = vmatpush1.msra.mxu0 %v1373
        %1583 = vmatprep.subr.mxu0 0.0
        %1584 = vmatpush1.msra.mxu0 %v1374
        %1585 = vmatprep.subr.mxu0 0.0
        %1586 = vmatpush1.msra.mxu0 %v1375
        %1587 = vmatprep.subr.mxu0 0.0
        %1588 = vmatpush1.msra.mxu0 %v1376
        %1589 = vmatprep.subr.mxu0 0.0
        %1590 = vmatpush1.msra.mxu0 %v1377
        %1591 = vmatprep.subr.mxu0 0.0
        %1592 = vmatpush1.msra.mxu0 %v1378
        %1593 = vmatprep.subr.mxu0 0.0
        %1594 = vmatpush1.msra.mxu0 %v1379
        %1595 = vmatprep.subr.mxu0 0.0
        %1596 = vmatpush1.msra.mxu0 %v1380
        %1597 = vmatprep.subr.mxu0 0.0
        %1598 = vmatpush1.msra.mxu0 %v1381
        %1599 = vmatprep.subr.mxu0 0.0
        %1600 = vmatpush1.msra.mxu0 %v1382
        %1601 = vmatprep.subr.mxu0 0.0
        %1602 = vmatpush1.msra.mxu0 %v1383
        %1603 = vmatprep.subr.mxu0 0.0
        %1604 = vmatpush1.msra.mxu0 %v1384
        %1605 = vmatprep.subr.mxu0 0.0
        %1606 = vmatpush1.msra.mxu0 %v1385
        %1607 = vmatprep.subr.mxu0 0.0
        %1608 = vmatpush1.msra.mxu0 %v1386
        %1609 = vmatprep.subr.mxu0 0.0
        %1610 = vmatpush1.msra.mxu0 %v1387
        %1611 = vmatprep.subr.mxu0 0.0
        %1612 = vmatpush1.msra.mxu0 %v1388
        %1613 = vmatprep.subr.mxu0 0.0
        %1614 = vmatpush1.msra.mxu0 %v1389
        %1615 = vmatprep.subr.mxu0 0.0
        %1616 = vmatpush1.msra.mxu0 %v1390
        %1617 = vmatprep.subr.mxu0 0.0
        %1618 = vmatpush1.msra.mxu0 %v1391
        %1619 = vmatprep.subr.mxu0 0.0
        %1620 = vmatpush1.msra.mxu0 %v1392
        %1621 = vmatprep.subr.mxu0 0.0
        %1622 = vmatpush1.msra.mxu0 %v1393
        %1623 = vmatprep.subr.mxu0 0.0
        %1624 = vmatpush1.msra.mxu0 %v1394
        %1625 = vmatprep.subr.mxu0 0.0
        %1626 = vmatpush1.msra.mxu0 %v1395
        %1627 = vmatprep.subr.mxu0 0.0
        %1628 = vmatpush1.msra.mxu0 %v1396
        %1629 = vmatprep.subr.mxu0 0.0
        %1630 = vmatpush1.msra.mxu0 %v1397
        %1631 = vmatprep.subr.mxu0 0.0
        %1632 = vmatpush1.msra.mxu0 %v1398
        %1633 = vmatprep.subr.mxu0 0.0
        %1634 = vmatpush1.msra.mxu0 %v1399
        %1635 = vmatprep.subr.mxu0 0.0
        %1636 = vmatpush1.msra.mxu0 %v1400
        %1637 = vmatprep.mubr.f32.mxu0 %v1522
        %1638 = vmatmul.mubr.f32.gmra.mrb[0].mxu0 %v1521
        %v1639 = vpop.f32.mrb[0].mxu0
        %v1640 = vadd.f32 0.0, %v1639
        %v1641 = vpop.f32.mrb[0].mxu0
        %1642 = vmatprep.mubr.f32.mxu0 %v1525
        %1643 = vmatmul.mubr.f32.gmra.mrb[0].mxu0 %v1524
        %v1644 = vpop.f32.mrb[0].mxu0
        %v1645 = vadd.f32 0.0, %v1644
        %v1646 = vpop.f32.mrb[0].mxu0
        %1647 = vmatprep.mubr.f32.mxu0 %v1528
        %1648 = vmatmul.mubr.f32.gmra.mrb[0].mxu0 %v1527
        %v1649 = vpop.f32.mrb[0].mxu0
        %v1650 = vadd.f32 0.0, %v1649
        %v1651 = vpop.f32.mrb[0].mxu0
        %1652 = vmatprep.mubr.f32.mxu0 %v1531
        %1653 = vmatmul.mubr.f32.gmra.mrb[0].mxu0 %v1530
        %v1654 = vpop.f32.mrb[0].mxu0
        %v1655 = vadd.f32 0.0, %v1654
        %v1656 = vpop.f32.mrb[0].mxu0
        %1657 = vmatprep.mubr.f32.mxu0 %v1534
        %1658 = vmatmul.mubr.f32.gmra.mrb[0].mxu0 %v1533
        %v1659 = vpop.f32.mrb[0].mxu0
        %v1660 = vadd.f32 0.0, %v1659
        %v1661 = vpop.f32.mrb[0].mxu0
        %1662 = vmatprep.mubr.f32.mxu0 %v1537
        %1663 = vmatmul.mubr.f32.gmra.mrb[0].mxu0 %v1536
        %v1664 = vpop.f32.mrb[0].mxu0
        %v1665 = vadd.f32 0.0, %v1664
        %v1666 = vpop.f32.mrb[0].mxu0
        %1667 = vmatprep.mubr.f32.mxu0 %v1540
        %1668 = vmatmul.mubr.f32.gmra.mrb[0].mxu0 %v1539
        %v1669 = vpop.f32.mrb[0].mxu0
        %v1670 = vadd.f32 0.0, %v1669
        %v1671 = vpop.f32.mrb[0].mxu0
        %1672 = vmatprep.mubr.f32.mxu0 %v1543
        %1673 = vmatmul.mubr.f32.gmra.mrb[0].mxu0 %v1542
        %v1674 = vpop.f32.mrb[0].mxu0
        %v1675 = vadd.f32 0.0, %v1674
        %v1676 = vpop.f32.mrb[0].mxu0
        %1677 = vmatprep.mubr.f32.mxu0 %v1546
        %1678 = vmatmul.mubr.f32.gmra.mrb[0].mxu0 %v1545
        %v1679 = vpop.f32.mrb[0].mxu0
        %v1680 = vadd.f32 0.0, %v1679
        %v1681 = vpop.f32.mrb[0].mxu0
        %1682 = vmatprep.mubr.f32.mxu0 %v1549
        %1683 = vmatmul.mubr.f32.gmra.mrb[0].mxu0 %v1548
        %v1684 = vpop.f32.mrb[0].mxu0
        %v1685 = vadd.f32 0.0, %v1684
        %v1686 = vpop.f32.mrb[0].mxu0
        %1687 = vmatprep.mubr.f32.mxu0 %v1552
        %1688 = vmatmul.mubr.f32.gmra.mrb[0].mxu0 %v1551
        %v1689 = vpop.f32.mrb[0].mxu0
        %v1690 = vadd.f32 0.0, %v1689
        %v1691 = vpop.f32.mrb[0].mxu0
        %1692 = vmatprep.mubr.f32.mxu0 %v1555
        %1693 = vmatmul.mubr.f32.gmra.mrb[0].mxu0 %v1554
        %v1694 = vpop.f32.mrb[0].mxu0
        %v1695 = vadd.f32 0.0, %v1694
        %v1696 = vpop.f32.mrb[0].mxu0
        %1697 = vmatprep.mubr.f32.mxu0 %v1558
        %1698 = vmatmul.mubr.f32.gmra.mrb[0].mxu0 %v1557
        %v1699 = vpop.f32.mrb[0].mxu0
        %v1700 = vadd.f32 0.0, %v1699
        %v1701 = vpop.f32.mrb[0].mxu0
        %1702 = vdwg.mxu0
        %1703 = vmatprep.subr.mxu0 0.0
        %1704 = vmatpush1.msra.mxu0 %v1401
        %1705 = vmatprep.subr.mxu0 0.0
        %1706 = vmatpush1.msra.mxu0 %v1402
        %1707 = vmatprep.subr.mxu0 0.0
        %1708 = vmatpush1.msra.mxu0 %v1403
        %1709 = vmatprep.subr.mxu0 0.0
        %1710 = vmatpush1.msra.mxu0 %v1404
        %1711 = vmatprep.subr.mxu0 0.0
        %1712 = vmatpush1.msra.mxu0 %v1405
        %1713 = vmatprep.subr.mxu0 0.0
        %1714 = vmatpush1.msra.mxu0 %v1406
        %1715 = vmatprep.subr.mxu0 0.0
        %1716 = vmatpush1.msra.mxu0 %v1407
        %1717 = vmatprep.subr.mxu0 0.0
        %1718 = vmatpush1.msra.mxu0 %v1408
        %1719 = vmatprep.subr.mxu0 0.0
        %1720 = vmatpush1.msra.mxu0 %v1409
        %1721 = vmatprep.subr.mxu0 0.0
        %1722 = vmatpush1.msra.mxu0 %v1410
        %1723 = vmatprep.subr.mxu0 0.0
        %1724 = vmatpush1.msra.mxu0 %v1411
        %1725 = vmatprep.subr.mxu0 0.0
        %1726 = vmatpush1.msra.mxu0 %v1412
        %1727 = vmatprep.subr.mxu0 0.0
        %1728 = vmatpush1.msra.mxu0 %v1413
        %1729 = vmatprep.subr.mxu0 0.0
        %1730 = vmatpush1.msra.mxu0 %v1414
        %1731 = vmatprep.subr.mxu0 0.0
        %1732 = vmatpush1.msra.mxu0 %v1415
        %1733 = vmatprep.subr.mxu0 0.0
        %1734 = vmatpush1.msra.mxu0 %v1416
        %1735 = vmatprep.subr.mxu0 0.0
        %1736 = vmatpush1.msra.mxu0 0.0
        %1737 = vmatprep.subr.mxu0 0.0
        %1738 = vmatpush1.msra.mxu0 0.0
        %1739 = vmatprep.subr.mxu0 0.0
        %1740 = vmatpush1.msra.mxu0 0.0
        %1741 = vmatprep.subr.mxu0 0.0
        %1742 = vmatpush1.msra.mxu0 0.0
        %1743 = vmatprep.subr.mxu0 0.0
        %1744 = vmatpush1.msra.mxu0 0.0
        %1745 = vmatprep.subr.mxu0 0.0
        %1746 = vmatpush1.msra.mxu0 0.0
        %1747 = vmatprep.subr.mxu0 0.0
        %1748 = vmatpush1.msra.mxu0 0.0
        %1749 = vmatprep.subr.mxu0 0.0
        %1750 = vmatpush1.msra.mxu0 0.0
        %1751 = vmatprep.subr.mxu0 0.0
        %1752 = vmatpush1.msra.mxu0 0.0
        %1753 = vmatprep.subr.mxu0 0.0
        %1754 = vmatpush1.msra.mxu0 0.0
        %1755 = vmatprep.subr.mxu0 0.0
        %1756 = vmatpush1.msra.mxu0 0.0
        %1757 = vmatprep.subr.mxu0 0.0
        %1758 = vmatpush1.msra.mxu0 0.0
        %1759 = vmatprep.subr.mxu0 0.0
        %1760 = vmatpush1.msra.mxu0 0.0
        %1761 = vmatprep.subr.mxu0 0.0
        %1762 = vmatpush1.msra.mxu0 0.0
        %1763 = vmatprep.subr.mxu0 0.0
        %1764 = vmatpush1.msra.mxu0 0.0
        %1765 = vmatprep.subr.mxu0 0.0
        %1766 = vmatpush1.msra.mxu0 0.0
        %1767 = vmatprep.mubr.f32.mxu0 0.0
        %1768 = vmatmul.mubr.f32.gmra.mrb[0].mxu0 %v1523
        %v1769 = vpop.f32.mrb[0].mxu0
        %v1770 = vadd.f32 %v1640, %v1769
        %v1771 = vpop.f32.mrb[0].mxu0
        %1772 = vmatprep.mubr.f32.mxu0 0.0
        %1773 = vmatmul.mubr.f32.gmra.mrb[0].mxu0 %v1526
        %v1774 = vpop.f32.mrb[0].mxu0
        %v1775 = vadd.f32 %v1645, %v1774
        %v1776 = vpop.f32.mrb[0].mxu0
        %1777 = vmatprep.mubr.f32.mxu0 0.0
        %1778 = vmatmul.mubr.f32.gmra.mrb[0].mxu0 %v1529
        %v1779 = vpop.f32.mrb[0].mxu0
        %v1780 = vadd.f32 %v1650, %v1779
        %v1781 = vpop.f32.mrb[0].mxu0
        %1782 = vmatprep.mubr.f32.mxu0 0.0
        %1783 = vmatmul.mubr.f32.gmra.mrb[0].mxu0 %v1532
        %v1784 = vpop.f32.mrb[0].mxu0
        %v1785 = vadd.f32 %v1655, %v1784
        %v1786 = vpop.f32.mrb[0].mxu0
        %1787 = vmatprep.mubr.f32.mxu0 0.0
        %1788 = vmatmul.mubr.f32.gmra.mrb[0].mxu0 %v1535
        %v1789 = vpop.f32.mrb[0].mxu0
        %v1790 = vadd.f32 %v1660, %v1789
        %v1791 = vpop.f32.mrb[0].mxu0
        %1792 = vmatprep.mubr.f32.mxu0 0.0
        %1793 = vmatmul.mubr.f32.gmra.mrb[0].mxu0 %v1538
        %v1794 = vpop.f32.mrb[0].mxu0
        %v1795 = vadd.f32 %v1665, %v1794
        %v1796 = vpop.f32.mrb[0].mxu0
        %1797 = vmatprep.mubr.f32.mxu0 0.0
        %1798 = vmatmul.mubr.f32.gmra.mrb[0].mxu0 %v1541
        %v1799 = vpop.f32.mrb[0].mxu0
        %v1800 = vadd.f32 %v1670, %v1799
        %v1801 = vpop.f32.mrb[0].mxu0
        %1802 = vmatprep.mubr.f32.mxu0 0.0
        %1803 = vmatmul.mubr.f32.gmra.mrb[0].mxu0 %v1544
        %v1804 = vpop.f32.mrb[0].mxu0
        %v1805 = vadd.f32 %v1675, %v1804
        %v1806 = vpop.f32.mrb[0].mxu0
        %1807 = vmatprep.mubr.f32.mxu0 0.0
        %1808 = vmatmul.mubr.f32.gmra.mrb[0].mxu0 %v1547
        %v1809 = vpop.f32.mrb[0].mxu0
        %v1810 = vadd.f32 %v1680, %v1809
        %v1811 = vpop.f32.mrb[0].mxu0
        %1812 = vmatprep.mubr.f32.mxu0 0.0
        %1813 = vmatmul.mubr.f32.gmra.mrb[0].mxu0 %v1550
        %v1814 = vpop.f32.mrb[0].mxu0
        %v1815 = vadd.f32 %v1685, %v1814
        %v1816 = vpop.f32.mrb[0].mxu0
        %1817 = vmatprep.mubr.f32.mxu0 0.0
        %1818 = vmatmul.mubr.f32.gmra.mrb[0].mxu0 %v1553
        %v1819 = vpop.f32.mrb[0].mxu0
        %v1820 = vadd.f32 %v1690, %v1819
        %v1821 = vpop.f32.mrb[0].mxu0
        %1822 = vmatprep.mubr.f32.mxu0 0.0
        %1823 = vmatmul.mubr.f32.gmra.mrb[0].mxu0 %v1556
        %v1824 = vpop.f32.mrb[0].mxu0
        %v1825 = vadd.f32 %v1695, %v1824
        %v1826 = vpop.f32.mrb[0].mxu0
        %1827 = vmatprep.mubr.f32.mxu0 0.0
        %1828 = vmatmul.mubr.f32.gmra.mrb[0].mxu0 %v1559
        %v1829 = vpop.f32.mrb[0].mxu0
        %v1830 = vadd.f32 %v1700, %v1829
        %v1831 = vpop.f32.mrb[0].mxu0
        %1832 = vdwg.mxu0
        %v1833 = vadd.f32 %v1560, %v1770
        %v1834 = vadd.f32 %v1561, %v1775
        %v1835 = vadd.f32 %v1562, %v1780
        %v1836 = vadd.f32 %v1563, %v1785
        %v1837 = vadd.f32 %v1564, %v1790
        %v1838 = vadd.f32 %v1565, %v1795
        %v1839 = vadd.f32 %v1566, %v1800
        %v1840 = vadd.f32 %v1567, %v1805
        %v1841 = vadd.f32 %v1568, %v1810
        %v1842 = vadd.f32 %v1569, %v1815
        %v1843 = vadd.f32 %v1570, %v1820
        %v1844 = vadd.f32 %v1571, %v1825
        %v1845 = vadd.f32 %v1572, %v1830
        %1846 = vst [vmem:[%s328] sm:$0xff] %v1833
        %1847 = vst [vmem:[%s328 + $0x8] sm:$0xff] %v1834
        %1848 = vst [vmem:[%s328 + $0x10] sm:$0xff] %v1835
        %1849 = vst [vmem:[%s328 + $0x18] sm:$0xff] %v1836
        %1850 = vst [vmem:[%s328 + $0x20] sm:$0xff] %v1837
        %1851 = vst [vmem:[%s328 + $0x28] sm:$0xff] %v1838
        %1852 = vst [vmem:[%s328 + $0x30] sm:$0xff] %v1839
        %1853 = vst [vmem:[%s328 + $0x38] sm:$0xff] %v1840
        %1854 = vst [vmem:[%s328 + $0x40] sm:$0xff] %v1841
        %1855 = vst [vmem:[%s328 + $0x48] sm:$0xff] %v1842
        %1856 = vst [vmem:[%s328 + $0x50] sm:$0xff] %v1843
        %1857 = vst [vmem:[%s328 + $0x58] sm:$0xff] %v1844
        %1858 = vst [vmem:[%s328 + $0x60] sm:$0xff] %v1845
        // Predicated region
        $region69: #{tpu_custom_call.1} parent=43 // pred_check
          %p1859 = pneg %p333
        $region70: #{tpu_custom_call.1} parent=43 // pred_check_branch
          %1861 = sbr.rel (%p1859) target = $region72
        $region71: #{tpu_custom_call.1} parent=43 // pred_region
          %v1862 = vld [vmem:[%s328] sm:$0xff]
          %v1863 = vld [vmem:[%s328 + $0x8] sm:$0xff]
          %v1864 = vld [vmem:[%s328 + $0x10] sm:$0xff]
          %v1865 = vld [vmem:[%s328 + $0x18] sm:$0xff]
          %v1866 = vld [vmem:[%s328 + $0x20] sm:$0xff]
          %v1867 = vld [vmem:[%s328 + $0x28] sm:$0xff]
          %v1868 = vld [vmem:[%s328 + $0x30] sm:$0xff]
          %v1869 = vld [vmem:[%s328 + $0x38] sm:$0xff]
          %v1870 = vld [vmem:[%s328 + $0x40] sm:$0xff]
          %v1871 = vld [vmem:[%s328 + $0x48] sm:$0xff]
          %v1872 = vld [vmem:[%s328 + $0x50] sm:$0xff]
          %v1873 = vld [vmem:[%s328 + $0x58] sm:$0xff]
          %v1874 = vld [vmem:[%s328 + $0x60] sm:$0xff]
          %v1875 = vld [vmem:[%s5] sm:$0x1]
          %v1876 = vld [vmem:[%s5 + $0x1] sm:$0x1]
          %v1877 = vld [vmem:[%s5 + $0x2] sm:$0x1]
          %v1878 = vld [vmem:[%s5 + $0x3] sm:$0x1]
          %v1879 = vld [vmem:[#allocation8] sm:$0xff]
          %v1880 = vld [vmem:[#allocation8 + $0x8] sm:$0xff]
          %v1881 = vld [vmem:[#allocation8 + $0x10] sm:$0xff]
          %v1882 = vld [vmem:[#allocation8 + $0x18] sm:$0xff]
          %v1883 = vld [vmem:[#allocation8 + $0x20] sm:$0xff]
          %v1884 = vld [vmem:[#allocation8 + $0x28] sm:$0xff]
          %v1885 = vld [vmem:[#allocation8 + $0x30] sm:$0xff]
          %v1886 = vld [vmem:[#allocation8 + $0x38] sm:$0xff]
          %v1887 = vld [vmem:[#allocation8 + $0x40] sm:$0xff]
          %v1888 = vld [vmem:[#allocation8 + $0x48] sm:$0xff]
          %v1889 = vld [vmem:[#allocation8 + $0x50] sm:$0xff]
          %v1890 = vld [vmem:[#allocation8 + $0x58] sm:$0xff]
          %v1891 = vld [vmem:[#allocation8 + $0x60] sm:$0xff]
          %v1892 = vld [vmem:[#allocation8 + $0x68] sm:$0xff]
          %v1893 = vld [vmem:[#allocation8 + $0x70] sm:$0xff]
          %v1894 = vld [vmem:[#allocation8 + $0x78] sm:$0xff]
          %v1895 = vlaneseq
          %v1896 = vshrl.u32 %v1895, 7
          %v1897 = vsub.s32 0, %v1896
          %v1898 = vrot.slane %v1875, %v1897
          %1899 = vmatprep.subr.mxu0 0.0
          %1900 = vmatpush1.msra.mxu0 %v1879
          %1901 = vmatprep.subr.mxu0 0.0
          %1902 = vmatpush1.msra.mxu0 %v1880
          %1903 = vmatprep.subr.mxu0 0.0
          %1904 = vmatpush1.msra.mxu0 %v1881
          %1905 = vmatprep.subr.mxu0 0.0
          %1906 = vmatpush1.msra.mxu0 %v1882
          %1907 = vmatprep.subr.mxu0 0.0
          %1908 = vmatpush1.msra.mxu0 %v1883
          %1909 = vmatprep.subr.mxu0 0.0
          %1910 = vmatpush1.msra.mxu0 %v1884
          %1911 = vmatprep.subr.mxu0 0.0
          %1912 = vmatpush1.msra.mxu0 %v1885
          %1913 = vmatprep.subr.mxu0 0.0
          %1914 = vmatpush1.msra.mxu0 %v1886
          %1915 = vmatprep.subr.mxu0 0.0
          %1916 = vmatpush1.msra.mxu0 %v1887
          %1917 = vmatprep.subr.mxu0 0.0
          %1918 = vmatpush1.msra.mxu0 %v1888
          %1919 = vmatprep.subr.mxu0 0.0
          %1920 = vmatpush1.msra.mxu0 %v1889
          %1921 = vmatprep.subr.mxu0 0.0
          %1922 = vmatpush1.msra.mxu0 %v1890
          %1923 = vmatprep.subr.mxu0 0.0
          %1924 = vmatpush1.msra.mxu0 %v1891
          %1925 = vmatprep.subr.mxu0 0.0
          %1926 = vmatpush1.msra.mxu0 %v1892
          %1927 = vmatprep.subr.mxu0 0.0
          %1928 = vmatpush1.msra.mxu0 %v1893
          %1929 = vmatprep.subr.mxu0 0.0
          %1930 = vmatpush1.msra.mxu0 %v1894
          %1931 = vmatprep.subr.mxu0 0.0
          %1932 = vmatpush1.msra.mxu0 0.0
          %1933 = vmatprep.subr.mxu0 0.0
          %1934 = vmatpush1.msra.mxu0 0.0
          %1935 = vmatprep.subr.mxu0 0.0
          %1936 = vmatpush1.msra.mxu0 0.0
          %1937 = vmatprep.subr.mxu0 0.0
          %1938 = vmatpush1.msra.mxu0 0.0
          %1939 = vmatprep.subr.mxu0 0.0
          %1940 = vmatpush1.msra.mxu0 0.0
          %1941 = vmatprep.subr.mxu0 0.0
          %1942 = vmatpush1.msra.mxu0 0.0
          %1943 = vmatprep.subr.mxu0 0.0
          %1944 = vmatpush1.msra.mxu0 0.0
          %1945 = vmatprep.subr.mxu0 0.0
          %1946 = vmatpush1.msra.mxu0 0.0
          %1947 = vmatprep.subr.mxu0 0.0
          %1948 = vmatpush1.msra.mxu0 0.0
          %1949 = vmatprep.subr.mxu0 0.0
          %1950 = vmatpush1.msra.mxu0 0.0
          %1951 = vmatprep.subr.mxu0 0.0
          %1952 = vmatpush1.msra.mxu0 0.0
          %1953 = vmatprep.subr.mxu0 0.0
          %1954 = vmatpush1.msra.mxu0 0.0
          %1955 = vmatprep.subr.mxu0 0.0
          %1956 = vmatpush1.msra.mxu0 0.0
          %1957 = vmatprep.subr.mxu0 0.0
          %1958 = vmatpush1.msra.mxu0 0.0
          %1959 = vmatprep.subr.mxu0 0.0
          %1960 = vmatpush1.msra.mxu0 0.0
          %1961 = vmatprep.subr.mxu0 0.0
          %1962 = vmatpush1.msra.mxu0 0.0
          %1963 = vmatprep.mubr.f32.mxu0 0.0
          %1964 = vmatmul.mubr.f32.gmra.mrb[0].mxu0 %v1862
          %v1965 = vpop.f32.mrb[0].mxu0
          %v1966 = vadd.f32 %v1898, %v1965
          %v1967 = vpop.f32.mrb[0].mxu0
          %1968 = vmatprep.mubr.f32.mxu0 0.0
          %1969 = vmatmul.mubr.f32.gmra.mrb[0].mxu0 %v1863
          %v1970 = vpop.f32.mrb[0].mxu0
          %v1971 = vadd.f32 %v1898, %v1970
          %v1972 = vpop.f32.mrb[0].mxu0
          %1973 = vmatprep.mubr.f32.mxu0 0.0
          %1974 = vmatmul.mubr.f32.gmra.mrb[0].mxu0 %v1864
          %v1975 = vpop.f32.mrb[0].mxu0
          %v1976 = vadd.f32 %v1898, %v1975
          %v1977 = vpop.f32.mrb[0].mxu0
          %1978 = vmatprep.mubr.f32.mxu0 0.0
          %1979 = vmatmul.mubr.f32.gmra.mrb[0].mxu0 %v1865
          %v1980 = vpop.f32.mrb[0].mxu0
          %v1981 = vadd.f32 %v1898, %v1980
          %v1982 = vpop.f32.mrb[0].mxu0
          %1983 = vmatprep.mubr.f32.mxu0 0.0
          %1984 = vmatmul.mubr.f32.gmra.mrb[0].mxu0 %v1866
          %v1985 = vpop.f32.mrb[0].mxu0
          %v1986 = vadd.f32 %v1898, %v1985
          %v1987 = vpop.f32.mrb[0].mxu0
          %1988 = vmatprep.mubr.f32.mxu0 0.0
          %1989 = vmatmul.mubr.f32.gmra.mrb[0].mxu0 %v1867
          %v1990 = vpop.f32.mrb[0].mxu0
          %v1991 = vadd.f32 %v1898, %v1990
          %v1992 = vpop.f32.mrb[0].mxu0
          %1993 = vmatprep.mubr.f32.mxu0 0.0
          %1994 = vmatmul.mubr.f32.gmra.mrb[0].mxu0 %v1868
          %v1995 = vpop.f32.mrb[0].mxu0
          %v1996 = vadd.f32 %v1898, %v1995
          %v1997 = vpop.f32.mrb[0].mxu0
          %1998 = vmatprep.mubr.f32.mxu0 0.0
          %1999 = vmatmul.mubr.f32.gmra.mrb[0].mxu0 %v1869
          %v2000 = vpop.f32.mrb[0].mxu0
          %v2001 = vadd.f32 %v1898, %v2000
          %v2002 = vpop.f32.mrb[0].mxu0
          %2003 = vmatprep.mubr.f32.mxu0 0.0
          %2004 = vmatmul.mubr.f32.gmra.mrb[0].mxu0 %v1870
          %v2005 = vpop.f32.mrb[0].mxu0
          %v2006 = vadd.f32 %v1898, %v2005
          %v2007 = vpop.f32.mrb[0].mxu0
          %2008 = vmatprep.mubr.f32.mxu0 0.0
          %2009 = vmatmul.mubr.f32.gmra.mrb[0].mxu0 %v1871
          %v2010 = vpop.f32.mrb[0].mxu0
          %v2011 = vadd.f32 %v1898, %v2010
          %v2012 = vpop.f32.mrb[0].mxu0
          %2013 = vmatprep.mubr.f32.mxu0 0.0
          %2014 = vmatmul.mubr.f32.gmra.mrb[0].mxu0 %v1872
          %v2015 = vpop.f32.mrb[0].mxu0
          %v2016 = vadd.f32 %v1898, %v2015
          %v2017 = vpop.f32.mrb[0].mxu0
          %2018 = vmatprep.mubr.f32.mxu0 0.0
          %2019 = vmatmul.mubr.f32.gmra.mrb[0].mxu0 %v1873
          %v2020 = vpop.f32.mrb[0].mxu0
          %v2021 = vadd.f32 %v1898, %v2020
          %v2022 = vpop.f32.mrb[0].mxu0
          %2023 = vmatprep.mubr.f32.mxu0 0.0
          %2024 = vmatmul.mubr.f32.gmra.mrb[0].mxu0 %v1874
          %v2025 = vpop.f32.mrb[0].mxu0
          %v2026 = vadd.f32 %v1898, %v2025
          %v2027 = vpop.f32.mrb[0].mxu0
          %2028 = vdwg.mxu0
          %v2029 = vmul.f32 %v1966, 0.5
          %v2030 = vmul.f32 %v1971, 0.5
          %v2031 = vmul.f32 %v1976, 0.5
          %v2032 = vmul.f32 %v1981, 0.5
          %v2033 = vmul.f32 %v1986, 0.5
          %v2034 = vmul.f32 %v1991, 0.5
          %v2035 = vmul.f32 %v1996, 0.5
          %v2036 = vmul.f32 %v2001, 0.5
          %v2037 = vmul.f32 %v2006, 0.5
          %v2038 = vmul.f32 %v2011, 0.5
          %v2039 = vmul.f32 %v2016, 0.5
          %v2040 = vmul.f32 %v2021, 0.5
          %v2041 = vmul.f32 %v2026, 0.5
          %v2042 = vmul.f32 %v1966, 0.70710677
          %v2043 = vmul.f32 %v1971, 0.70710677
          %v2044 = vmul.f32 %v1976, 0.70710677
          %v2045 = vmul.f32 %v1981, 0.70710677
          %v2046 = vmul.f32 %v1986, 0.70710677
          %v2047 = vmul.f32 %v1991, 0.70710677
          %v2048 = vmul.f32 %v1996, 0.70710677
          %v2049 = vmul.f32 %v2001, 0.70710677
          %v2050 = vmul.f32 %v2006, 0.70710677
          %v2051 = vmul.f32 %v2011, 0.70710677
          %v2052 = vmul.f32 %v2016, 0.70710677
          %v2053 = vmul.f32 %v2021, 0.70710677
          %v2054 = vmul.f32 %v2026, 0.70710677
          %vm2055 = vcmp.ge.f32.partialorder %v2042, 0.0
          %vm2056 = vcmp.ge.f32.partialorder %v2043, 0.0
          %vm2057 = vcmp.ge.f32.partialorder %v2044, 0.0
          %vm2058 = vcmp.ge.f32.partialorder %v2045, 0.0
          %vm2059 = vcmp.ge.f32.partialorder %v2046, 0.0
          %vm2060 = vcmp.ge.f32.partialorder %v2047, 0.0
          %vm2061 = vcmp.ge.f32.partialorder %v2048, 0.0
          %vm2062 = vcmp.ge.f32.partialorder %v2049, 0.0
          %vm2063 = vcmp.ge.f32.partialorder %v2050, 0.0
          %vm2064 = vcmp.ge.f32.partialorder %v2051, 0.0
          %vm2065 = vcmp.ge.f32.partialorder %v2052, 0.0
          %vm2066 = vcmp.ge.f32.partialorder %v2053, 0.0
          %vm2067 = vcmp.ge.f32.partialorder %v2054, 0.0
          %v2068 = vsel %vm2055, 1.0, -1.0
          %v2069 = vsel %vm2056, 1.0, -1.0
          %v2070 = vsel %vm2057, 1.0, -1.0
          %v2071 = vsel %vm2058, 1.0, -1.0
          %v2072 = vsel %vm2059, 1.0, -1.0
          %v2073 = vsel %vm2060, 1.0, -1.0
          %v2074 = vsel %vm2061, 1.0, -1.0
          %v2075 = vsel %vm2062, 1.0, -1.0
          %v2076 = vsel %vm2063, 1.0, -1.0
          %v2077 = vsel %vm2064, 1.0, -1.0
          %v2078 = vsel %vm2065, 1.0, -1.0
          %v2079 = vsel %vm2066, 1.0, -1.0
          %v2080 = vsel %vm2067, 1.0, -1.0
          %v2081 = vand.u32 2147483647, %v2042
          %v2082 = vand.u32 2147483647, %v2043
          %v2083 = vand.u32 2147483647, %v2044
          %v2084 = vand.u32 2147483647, %v2045
          %v2085 = vand.u32 2147483647, %v2046
          %v2086 = vand.u32 2147483647, %v2047
          %v2087 = vand.u32 2147483647, %v2048
          %v2088 = vand.u32 2147483647, %v2049
          %v2089 = vand.u32 2147483647, %v2050
          %v2090 = vand.u32 2147483647, %v2051
          %v2091 = vand.u32 2147483647, %v2052
          %v2092 = vand.u32 2147483647, %v2053
          %v2093 = vand.u32 2147483647, %v2054
          %v2094 = vmul.f32 %v2081, 0.3275911
          %v2095 = vmul.f32 %v2082, 0.3275911
          %v2096 = vmul.f32 %v2083, 0.3275911
          %v2097 = vmul.f32 %v2084, 0.3275911
          %v2098 = vmul.f32 %v2085, 0.3275911
          %v2099 = vmul.f32 %v2086, 0.3275911
          %v2100 = vmul.f32 %v2087, 0.3275911
          %v2101 = vmul.f32 %v2088, 0.3275911
          %v2102 = vmul.f32 %v2089, 0.3275911
          %v2103 = vmul.f32 %v2090, 0.3275911
          %v2104 = vmul.f32 %v2091, 0.3275911
          %v2105 = vmul.f32 %v2092, 0.3275911
          %v2106 = vmul.f32 %v2093, 0.3275911
          %v2107 = vadd.f32 %v2094, 1.0
          %v2108 = vadd.f32 %v2095, 1.0
          %v2109 = vadd.f32 %v2096, 1.0
          %v2110 = vadd.f32 %v2097, 1.0
          %v2111 = vadd.f32 %v2098, 1.0
          %v2112 = vadd.f32 %v2099, 1.0
          %v2113 = vadd.f32 %v2100, 1.0
          %v2114 = vadd.f32 %v2101, 1.0
          %v2115 = vadd.f32 %v2102, 1.0
          %v2116 = vadd.f32 %v2103, 1.0
          %v2117 = vadd.f32 %v2104, 1.0
          %v2118 = vadd.f32 %v2105, 1.0
          %v2119 = vadd.f32 %v2106, 1.0
          %v2120 = vrcp.pop %v2107
          %v2121 = vmul.f32 1.0, %v2120
          %v2122 = vrcp.pop %v2108
          %v2123 = vmul.f32 1.0, %v2122
          %v2124 = vrcp.pop %v2109
          %v2125 = vmul.f32 1.0, %v2124
          %v2126 = vrcp.pop %v2110
          %v2127 = vmul.f32 1.0, %v2126
          %v2128 = vrcp.pop %v2111
          %v2129 = vmul.f32 1.0, %v2128
          %v2130 = vrcp.pop %v2112
          %v2131 = vmul.f32 1.0, %v2130
          %v2132 = vrcp.pop %v2113
          %v2133 = vmul.f32 1.0, %v2132
          %v2134 = vrcp.pop %v2114
          %v2135 = vmul.f32 1.0, %v2134
          %v2136 = vrcp.pop %v2115
          %v2137 = vmul.f32 1.0, %v2136
          %v2138 = vrcp.pop %v2116
          %v2139 = vmul.f32 1.0, %v2138
          %v2140 = vrcp.pop %v2117
          %v2141 = vmul.f32 1.0, %v2140
          %v2142 = vrcp.pop %v2118
          %v2143 = vmul.f32 1.0, %v2142
          %v2144 = vrcp.pop %v2119
          %v2145 = vmul.f32 1.0, %v2144
          %v2146 = vmul.f32 %v2121, 1.0614054
          %v2147 = vmul.f32 %v2123, 1.0614054
          %v2148 = vmul.f32 %v2125, 1.0614054
          %v2149 = vmul.f32 %v2127, 1.0614054
          %v2150 = vmul.f32 %v2129, 1.0614054
          %v2151 = vmul.f32 %v2131, 1.0614054
          %v2152 = vmul.f32 %v2133, 1.0614054
          %v2153 = vmul.f32 %v2135, 1.0614054
          %v2154 = vmul.f32 %v2137, 1.0614054
          %v2155 = vmul.f32 %v2139, 1.0614054
          %v2156 = vmul.f32 %v2141, 1.0614054
          %v2157 = vmul.f32 %v2143, 1.0614054
          %v2158 = vmul.f32 %v2145, 1.0614054
          %v2159 = vsub.f32 %v2146, 1.4531521
          %v2160 = vsub.f32 %v2147, 1.4531521
          %v2161 = vsub.f32 %v2148, 1.4531521
          %v2162 = vsub.f32 %v2149, 1.4531521
          %v2163 = vsub.f32 %v2150, 1.4531521
          %v2164 = vsub.f32 %v2151, 1.4531521
          %v2165 = vsub.f32 %v2152, 1.4531521
          %v2166 = vsub.f32 %v2153, 1.4531521
          %v2167 = vsub.f32 %v2154, 1.4531521
          %v2168 = vsub.f32 %v2155, 1.4531521
          %v2169 = vsub.f32 %v2156, 1.4531521
          %v2170 = vsub.f32 %v2157, 1.4531521
          %v2171 = vsub.f32 %v2158, 1.4531521
          %v2172 = vmul.f32 %v2159, %v2121
          %v2173 = vmul.f32 %v2160, %v2123
          %v2174 = vmul.f32 %v2161, %v2125
          %v2175 = vmul.f32 %v2162, %v2127
          %v2176 = vmul.f32 %v2163, %v2129
          %v2177 = vmul.f32 %v2164, %v2131
          %v2178 = vmul.f32 %v2165, %v2133
          %v2179 = vmul.f32 %v2166, %v2135
          %v2180 = vmul.f32 %v2167, %v2137
          %v2181 = vmul.f32 %v2168, %v2139
          %v2182 = vmul.f32 %v2169, %v2141
          %v2183 = vmul.f32 %v2170, %v2143
          %v2184 = vmul.f32 %v2171, %v2145
          %v2185 = vadd.f32 %v2172, 1.4214138
          %v2186 = vadd.f32 %v2173, 1.4214138
          %v2187 = vadd.f32 %v2174, 1.4214138
          %v2188 = vadd.f32 %v2175, 1.4214138
          %v2189 = vadd.f32 %v2176, 1.4214138
          %v2190 = vadd.f32 %v2177, 1.4214138
          %v2191 = vadd.f32 %v2178, 1.4214138
          %v2192 = vadd.f32 %v2179, 1.4214138
          %v2193 = vadd.f32 %v2180, 1.4214138
          %v2194 = vadd.f32 %v2181, 1.4214138
          %v2195 = vadd.f32 %v2182, 1.4214138
          %v2196 = vadd.f32 %v2183, 1.4214138
          %v2197 = vadd.f32 %v2184, 1.4214138
          %v2198 = vmul.f32 %v2185, %v2121
          %v2199 = vmul.f32 %v2186, %v2123
          %v2200 = vmul.f32 %v2187, %v2125
          %v2201 = vmul.f32 %v2188, %v2127
          %v2202 = vmul.f32 %v2189, %v2129
          %v2203 = vmul.f32 %v2190, %v2131
          %v2204 = vmul.f32 %v2191, %v2133
          %v2205 = vmul.f32 %v2192, %v2135
          %v2206 = vmul.f32 %v2193, %v2137
          %v2207 = vmul.f32 %v2194, %v2139
          %v2208 = vmul.f32 %v2195, %v2141
          %v2209 = vmul.f32 %v2196, %v2143
          %v2210 = vmul.f32 %v2197, %v2145
          %v2211 = vsub.f32 %v2198, 0.28449672
          %v2212 = vsub.f32 %v2199, 0.28449672
          %v2213 = vsub.f32 %v2200, 0.28449672
          %v2214 = vsub.f32 %v2201, 0.28449672
          %v2215 = vsub.f32 %v2202, 0.28449672
          %v2216 = vsub.f32 %v2203, 0.28449672
          %v2217 = vsub.f32 %v2204, 0.28449672
          %v2218 = vsub.f32 %v2205, 0.28449672
          %v2219 = vsub.f32 %v2206, 0.28449672
          %v2220 = vsub.f32 %v2207, 0.28449672
          %v2221 = vsub.f32 %v2208, 0.28449672
          %v2222 = vsub.f32 %v2209, 0.28449672
          %v2223 = vsub.f32 %v2210, 0.28449672
          %v2224 = vmul.f32 %v2211, %v2121
          %v2225 = vmul.f32 %v2212, %v2123
          %v2226 = vmul.f32 %v2213, %v2125
          %v2227 = vmul.f32 %v2214, %v2127
          %v2228 = vmul.f32 %v2215, %v2129
          %v2229 = vmul.f32 %v2216, %v2131
          %v2230 = vmul.f32 %v2217, %v2133
          %v2231 = vmul.f32 %v2218, %v2135
          %v2232 = vmul.f32 %v2219, %v2137
          %v2233 = vmul.f32 %v2220, %v2139
          %v2234 = vmul.f32 %v2221, %v2141
          %v2235 = vmul.f32 %v2222, %v2143
          %v2236 = vmul.f32 %v2223, %v2145
          %v2237 = vadd.f32 %v2224, 0.2548296
          %v2238 = vadd.f32 %v2225, 0.2548296
          %v2239 = vadd.f32 %v2226, 0.2548296
          %v2240 = vadd.f32 %v2227, 0.2548296
          %v2241 = vadd.f32 %v2228, 0.2548296
          %v2242 = vadd.f32 %v2229, 0.2548296
          %v2243 = vadd.f32 %v2230, 0.2548296
          %v2244 = vadd.f32 %v2231, 0.2548296
          %v2245 = vadd.f32 %v2232, 0.2548296
          %v2246 = vadd.f32 %v2233, 0.2548296
          %v2247 = vadd.f32 %v2234, 0.2548296
          %v2248 = vadd.f32 %v2235, 0.2548296
          %v2249 = vadd.f32 %v2236, 0.2548296
          %v2250 = vmul.f32 %v2237, %v2121
          %v2251 = vmul.f32 %v2238, %v2123
          %v2252 = vmul.f32 %v2239, %v2125
          %v2253 = vmul.f32 %v2240, %v2127
          %v2254 = vmul.f32 %v2241, %v2129
          %v2255 = vmul.f32 %v2242, %v2131
          %v2256 = vmul.f32 %v2243, %v2133
          %v2257 = vmul.f32 %v2244, %v2135
          %v2258 = vmul.f32 %v2245, %v2137
          %v2259 = vmul.f32 %v2246, %v2139
          %v2260 = vmul.f32 %v2247, %v2141
          %v2261 = vmul.f32 %v2248, %v2143
          %v2262 = vmul.f32 %v2249, %v2145
          %v2263 = vsub.f32 0.0, %v2081
          %v2264 = vsub.f32 0.0, %v2082
          %v2265 = vsub.f32 0.0, %v2083
          %v2266 = vsub.f32 0.0, %v2084
          %v2267 = vsub.f32 0.0, %v2085
          %v2268 = vsub.f32 0.0, %v2086
          %v2269 = vsub.f32 0.0, %v2087
          %v2270 = vsub.f32 0.0, %v2088
          %v2271 = vsub.f32 0.0, %v2089
          %v2272 = vsub.f32 0.0, %v2090
          %v2273 = vsub.f32 0.0, %v2091
          %v2274 = vsub.f32 0.0, %v2092
          %v2275 = vsub.f32 0.0, %v2093
          %v2276 = vmul.f32 %v2263, %v2081
          %v2277 = vmul.f32 %v2264, %v2082
          %v2278 = vmul.f32 %v2265, %v2083
          %v2279 = vmul.f32 %v2266, %v2084
          %v2280 = vmul.f32 %v2267, %v2085
          %v2281 = vmul.f32 %v2268, %v2086
          %v2282 = vmul.f32 %v2269, %v2087
          %v2283 = vmul.f32 %v2270, %v2088
          %v2284 = vmul.f32 %v2271, %v2089
          %v2285 = vmul.f32 %v2272, %v2090
          %v2286 = vmul.f32 %v2273, %v2091
          %v2287 = vmul.f32 %v2274, %v2092
          %v2288 = vmul.f32 %v2275, %v2093
          %v2289 = vmul.f32 %v2276, 1.442695
          %v2290 = vpow.pop %v2289
          %v2291 = vmul.f32 %v2277, 1.442695
          %v2292 = vpow.pop %v2291
          %v2293 = vmul.f32 %v2278, 1.442695
          %v2294 = vpow.pop %v2293
          %v2295 = vmul.f32 %v2279, 1.442695
          %v2296 = vpow.pop %v2295
          %v2297 = vmul.f32 %v2280, 1.442695
          %v2298 = vpow.pop %v2297
          %v2299 = vmul.f32 %v2281, 1.442695
          %v2300 = vpow.pop %v2299
          %v2301 = vmul.f32 %v2282, 1.442695
          %v2302 = vpow.pop %v2301
          %v2303 = vmul.f32 %v2283, 1.442695
          %v2304 = vpow.pop %v2303
          %v2305 = vmul.f32 %v2284, 1.442695
          %v2306 = vpow.pop %v2305
          %v2307 = vmul.f32 %v2285, 1.442695
          %v2308 = vpow.pop %v2307
          %v2309 = vmul.f32 %v2286, 1.442695
          %v2310 = vpow.pop %v2309
          %v2311 = vmul.f32 %v2287, 1.442695
          %v2312 = vpow.pop %v2311
          %v2313 = vmul.f32 %v2288, 1.442695
          %v2314 = vpow.pop %v2313
          %v2315 = vmul.f32 %v2250, %v2290
          %v2316 = vmul.f32 %v2251, %v2292
          %v2317 = vmul.f32 %v2252, %v2294
          %v2318 = vmul.f32 %v2253, %v2296
          %v2319 = vmul.f32 %v2254, %v2298
          %v2320 = vmul.f32 %v2255, %v2300
          %v2321 = vmul.f32 %v2256, %v2302
          %v2322 = vmul.f32 %v2257, %v2304
          %v2323 = vmul.f32 %v2258, %v2306
          %v2324 = vmul.f32 %v2259, %v2308
          %v2325 = vmul.f32 %v2260, %v2310
          %v2326 = vmul.f32 %v2261, %v2312
          %v2327 = vmul.f32 %v2262, %v2314
          %v2328 = vsub.f32 1.0, %v2315
          %v2329 = vsub.f32 1.0, %v2316
          %v2330 = vsub.f32 1.0, %v2317
          %v2331 = vsub.f32 1.0, %v2318
          %v2332 = vsub.f32 1.0, %v2319
          %v2333 = vsub.f32 1.0, %v2320
          %v2334 = vsub.f32 1.0, %v2321
          %v2335 = vsub.f32 1.0, %v2322
          %v2336 = vsub.f32 1.0, %v2323
          %v2337 = vsub.f32 1.0, %v2324
          %v2338 = vsub.f32 1.0, %v2325
          %v2339 = vsub.f32 1.0, %v2326
          %v2340 = vsub.f32 1.0, %v2327
          %v2341 = vmul.f32 %v2068, %v2328
          %v2342 = vmul.f32 %v2069, %v2329
          %v2343 = vmul.f32 %v2070, %v2330
          %v2344 = vmul.f32 %v2071, %v2331
          %v2345 = vmul.f32 %v2072, %v2332
          %v2346 = vmul.f32 %v2073, %v2333
          %v2347 = vmul.f32 %v2074, %v2334
          %v2348 = vmul.f32 %v2075, %v2335
          %v2349 = vmul.f32 %v2076, %v2336
          %v2350 = vmul.f32 %v2077, %v2337
          %v2351 = vmul.f32 %v2078, %v2338
          %v2352 = vmul.f32 %v2079, %v2339
          %v2353 = vmul.f32 %v2080, %v2340
          %v2354 = vadd.f32 %v2341, 1.0
          %v2355 = vadd.f32 %v2342, 1.0
          %v2356 = vadd.f32 %v2343, 1.0
          %v2357 = vadd.f32 %v2344, 1.0
          %v2358 = vadd.f32 %v2345, 1.0
          %v2359 = vadd.f32 %v2346, 1.0
          %v2360 = vadd.f32 %v2347, 1.0
          %v2361 = vadd.f32 %v2348, 1.0
          %v2362 = vadd.f32 %v2349, 1.0
          %v2363 = vadd.f32 %v2350, 1.0
          %v2364 = vadd.f32 %v2351, 1.0
          %v2365 = vadd.f32 %v2352, 1.0
          %v2366 = vadd.f32 %v2353, 1.0
          %v2367 = vmul.f32 %v2029, %v2354
          %v2368 = vmul.f32 %v2030, %v2355
          %v2369 = vmul.f32 %v2031, %v2356
          %v2370 = vmul.f32 %v2032, %v2357
          %v2371 = vmul.f32 %v2033, %v2358
          %v2372 = vmul.f32 %v2034, %v2359
          %v2373 = vmul.f32 %v2035, %v2360
          %v2374 = vmul.f32 %v2036, %v2361
          %v2375 = vmul.f32 %v2037, %v2362
          %v2376 = vmul.f32 %v2038, %v2363
          %v2377 = vmul.f32 %v2039, %v2364
          %v2378 = vmul.f32 %v2040, %v2365
          %v2379 = vmul.f32 %v2041, %v2366
          %v2380 = vld [vmem:[#allocation10] sm:$0xff]
          %v2381 = vld [vmem:[#allocation10 + $0x8] sm:$0xff]
          %v2382 = vld [vmem:[#allocation10 + $0x10] sm:$0xff]
          %v2383 = vld [vmem:[#allocation10 + $0x18] sm:$0xff]
          %v2384 = vld [vmem:[#allocation10 + $0x20] sm:$0xff]
          %v2385 = vld [vmem:[#allocation10 + $0x28] sm:$0xff]
          %v2386 = vld [vmem:[#allocation10 + $0x30] sm:$0xff]
          %v2387 = vld [vmem:[#allocation10 + $0x38] sm:$0xff]
          %v2388 = vld [vmem:[#allocation10 + $0x40] sm:$0xff]
          %v2389 = vld [vmem:[#allocation10 + $0x48] sm:$0xff]
          %v2390 = vld [vmem:[#allocation10 + $0x50] sm:$0xff]
          %v2391 = vld [vmem:[#allocation10 + $0x58] sm:$0xff]
          %v2392 = vld [vmem:[#allocation10 + $0x60] sm:$0xff]
          %v2393 = vld [vmem:[#allocation10 + $0x68] sm:$0xff]
          %v2394 = vld [vmem:[#allocation10 + $0x70] sm:$0xff]
          %v2395 = vld [vmem:[#allocation10 + $0x78] sm:$0xff]
          %v2396 = vlaneseq
          %v2397 = vshrl.u32 %v2396, 7
          %v2398 = vsub.s32 0, %v2397
          %v2399 = vrot.slane %v1876, %v2398
          %2400 = vmatprep.subr.mxu0 0.0
          %2401 = vmatpush1.msra.mxu0 %v2380
          %2402 = vmatprep.subr.mxu0 0.0
          %2403 = vmatpush1.msra.mxu0 %v2381
          %2404 = vmatprep.subr.mxu0 0.0
          %2405 = vmatpush1.msra.mxu0 %v2382
          %2406 = vmatprep.subr.mxu0 0.0
          %2407 = vmatpush1.msra.mxu0 %v2383
          %2408 = vmatprep.subr.mxu0 0.0
          %2409 = vmatpush1.msra.mxu0 %v2384
          %2410 = vmatprep.subr.mxu0 0.0
          %2411 = vmatpush1.msra.mxu0 %v2385
          %2412 = vmatprep.subr.mxu0 0.0
          %2413 = vmatpush1.msra.mxu0 %v2386
          %2414 = vmatprep.subr.mxu0 0.0
          %2415 = vmatpush1.msra.mxu0 %v2387
          %2416 = vmatprep.subr.mxu0 0.0
          %2417 = vmatpush1.msra.mxu0 %v2388
          %2418 = vmatprep.subr.mxu0 0.0
          %2419 = vmatpush1.msra.mxu0 %v2389
          %2420 = vmatprep.subr.mxu0 0.0
          %2421 = vmatpush1.msra.mxu0 %v2390
          %2422 = vmatprep.subr.mxu0 0.0
          %2423 = vmatpush1.msra.mxu0 %v2391
          %2424 = vmatprep.subr.mxu0 0.0
          %2425 = vmatpush1.msra.mxu0 %v2392
          %2426 = vmatprep.subr.mxu0 0.0
          %2427 = vmatpush1.msra.mxu0 %v2393
          %2428 = vmatprep.subr.mxu0 0.0
          %2429 = vmatpush1.msra.mxu0 %v2394
          %2430 = vmatprep.subr.mxu0 0.0
          %2431 = vmatpush1.msra.mxu0 %v2395
          %2432 = vmatprep.subr.mxu0 0.0
          %2433 = vmatpush1.msra.mxu0 0.0
          %2434 = vmatprep.subr.mxu0 0.0
          %2435 = vmatpush1.msra.mxu0 0.0
          %2436 = vmatprep.subr.mxu0 0.0
          %2437 = vmatpush1.msra.mxu0 0.0
          %2438 = vmatprep.subr.mxu0 0.0
          %2439 = vmatpush1.msra.mxu0 0.0
          %2440 = vmatprep.subr.mxu0 0.0
          %2441 = vmatpush1.msra.mxu0 0.0
          %2442 = vmatprep.subr.mxu0 0.0
          %2443 = vmatpush1.msra.mxu0 0.0
          %2444 = vmatprep.subr.mxu0 0.0
          %2445 = vmatpush1.msra.mxu0 0.0
          %2446 = vmatprep.subr.mxu0 0.0
          %2447 = vmatpush1.msra.mxu0 0.0
          %2448 = vmatprep.subr.mxu0 0.0
          %2449 = vmatpush1.msra.mxu0 0.0
          %2450 = vmatprep.subr.mxu0 0.0
          %2451 = vmatpush1.msra.mxu0 0.0
          %2452 = vmatprep.subr.mxu0 0.0
          %2453 = vmatpush1.msra.mxu0 0.0
          %2454 = vmatprep.subr.mxu0 0.0
          %2455 = vmatpush1.msra.mxu0 0.0
          %2456 = vmatprep.subr.mxu0 0.0
          %2457 = vmatpush1.msra.mxu0 0.0
          %2458 = vmatprep.subr.mxu0 0.0
          %2459 = vmatpush1.msra.mxu0 0.0
          %2460 = vmatprep.subr.mxu0 0.0
          %2461 = vmatpush1.msra.mxu0 0.0
          %2462 = vmatprep.subr.mxu0 0.0
          %2463 = vmatpush1.msra.mxu0 0.0
          %2464 = vmatprep.mubr.f32.mxu0 0.0
          %2465 = vmatmul.mubr.f32.gmra.mrb[0].mxu0 %v2367
          %v2466 = vpop.f32.mrb[0].mxu0
          %v2467 = vadd.f32 %v2399, %v2466
          %v2468 = vpop.f32.mrb[0].mxu0
          %2469 = vmatprep.mubr.f32.mxu0 0.0
          %2470 = vmatmul.mubr.f32.gmra.mrb[0].mxu0 %v2368
          %v2471 = vpop.f32.mrb[0].mxu0
          %v2472 = vadd.f32 %v2399, %v2471
          %v2473 = vpop.f32.mrb[0].mxu0
          %2474 = vmatprep.mubr.f32.mxu0 0.0
          %2475 = vmatmul.mubr.f32.gmra.mrb[0].mxu0 %v2369
          %v2476 = vpop.f32.mrb[0].mxu0
          %v2477 = vadd.f32 %v2399, %v2476
          %v2478 = vpop.f32.mrb[0].mxu0
          %2479 = vmatprep.mubr.f32.mxu0 0.0
          %2480 = vmatmul.mubr.f32.gmra.mrb[0].mxu0 %v2370
          %v2481 = vpop.f32.mrb[0].mxu0
          %v2482 = vadd.f32 %v2399, %v2481
          %v2483 = vpop.f32.mrb[0].mxu0
          %2484 = vmatprep.mubr.f32.mxu0 0.0
          %2485 = vmatmul.mubr.f32.gmra.mrb[0].mxu0 %v2371
          %v2486 = vpop.f32.mrb[0].mxu0
          %v2487 = vadd.f32 %v2399, %v2486
          %v2488 = vpop.f32.mrb[0].mxu0
          %2489 = vmatprep.mubr.f32.mxu0 0.0
          %2490 = vmatmul.mubr.f32.gmra.mrb[0].mxu0 %v2372
          %v2491 = vpop.f32.mrb[0].mxu0
          %v2492 = vadd.f32 %v2399, %v2491
          %v2493 = vpop.f32.mrb[0].mxu0
          %2494 = vmatprep.mubr.f32.mxu0 0.0
          %2495 = vmatmul.mubr.f32.gmra.mrb[0].mxu0 %v2373
          %v2496 = vpop.f32.mrb[0].mxu0
          %v2497 = vadd.f32 %v2399, %v2496
          %v2498 = vpop.f32.mrb[0].mxu0
          %2499 = vmatprep.mubr.f32.mxu0 0.0
          %2500 = vmatmul.mubr.f32.gmra.mrb[0].mxu0 %v2374
          %v2501 = vpop.f32.mrb[0].mxu0
          %v2502 = vadd.f32 %v2399, %v2501
          %v2503 = vpop.f32.mrb[0].mxu0
          %2504 = vmatprep.mubr.f32.mxu0 0.0
          %2505 = vmatmul.mubr.f32.gmra.mrb[0].mxu0 %v2375
          %v2506 = vpop.f32.mrb[0].mxu0
          %v2507 = vadd.f32 %v2399, %v2506
          %v2508 = vpop.f32.mrb[0].mxu0
          %2509 = vmatprep.mubr.f32.mxu0 0.0
          %2510 = vmatmul.mubr.f32.gmra.mrb[0].mxu0 %v2376
          %v2511 = vpop.f32.mrb[0].mxu0
          %v2512 = vadd.f32 %v2399, %v2511
          %v2513 = vpop.f32.mrb[0].mxu0
          %2514 = vmatprep.mubr.f32.mxu0 0.0
          %2515 = vmatmul.mubr.f32.gmra.mrb[0].mxu0 %v2377
          %v2516 = vpop.f32.mrb[0].mxu0
          %v2517 = vadd.f32 %v2399, %v2516
          %v2518 = vpop.f32.mrb[0].mxu0
          %2519 = vmatprep.mubr.f32.mxu0 0.0
          %2520 = vmatmul.mubr.f32.gmra.mrb[0].mxu0 %v2378
          %v2521 = vpop.f32.mrb[0].mxu0
          %v2522 = vadd.f32 %v2399, %v2521
          %v2523 = vpop.f32.mrb[0].mxu0
          %2524 = vmatprep.mubr.f32.mxu0 0.0
          %2525 = vmatmul.mubr.f32.gmra.mrb[0].mxu0 %v2379
          %v2526 = vpop.f32.mrb[0].mxu0
          %v2527 = vadd.f32 %v2399, %v2526
          %v2528 = vpop.f32.mrb[0].mxu0
          %2529 = vdwg.mxu0
          %v2530 = vadd.f32 %v1862, %v2467
          %v2531 = vadd.f32 %v1863, %v2472
          %v2532 = vadd.f32 %v1864, %v2477
          %v2533 = vadd.f32 %v1865, %v2482
          %v2534 = vadd.f32 %v1866, %v2487
          %v2535 = vadd.f32 %v1867, %v2492
          %v2536 = vadd.f32 %v1868, %v2497
          %v2537 = vadd.f32 %v1869, %v2502
          %v2538 = vadd.f32 %v1870, %v2507
          %v2539 = vadd.f32 %v1871, %v2512
          %v2540 = vadd.f32 %v1872, %v2517
          %v2541 = vadd.f32 %v1873, %v2522
          %v2542 = vadd.f32 %v1874, %v2527
          %v2543 = vlaneseq
          %v2544 = vshrl.u32 %v2543, 7
          %v2545 = vsub.s32 0, %v2544
          %v2546 = vrot.slane %v1877, %v2545
          %v2547 = vmul.f32 %v2530, %v2546
          %v2548 = vmul.f32 %v2531, %v2546
          %v2549 = vmul.f32 %v2532, %v2546
          %v2550 = vmul.f32 %v2533, %v2546
          %v2551 = vmul.f32 %v2534, %v2546
          %v2552 = vmul.f32 %v2535, %v2546
          %v2553 = vmul.f32 %v2536, %v2546
          %v2554 = vmul.f32 %v2537, %v2546
          %v2555 = vmul.f32 %v2538, %v2546
          %v2556 = vmul.f32 %v2539, %v2546
          %v2557 = vmul.f32 %v2540, %v2546
          %v2558 = vmul.f32 %v2541, %v2546
          %v2559 = vmul.f32 %v2542, %v2546
          %v2560 = vlaneseq
          %v2561 = vshrl.u32 %v2560, 7
          %v2562 = vsub.s32 0, %v2561
          %v2563 = vrot.slane %v1878, %v2562
          %v2564 = vadd.f32 %v2547, %v2563
          %v2565 = vadd.f32 %v2548, %v2563
          %v2566 = vadd.f32 %v2549, %v2563
          %v2567 = vadd.f32 %v2550, %v2563
          %v2568 = vadd.f32 %v2551, %v2563
          %v2569 = vadd.f32 %v2552, %v2563
          %v2570 = vadd.f32 %v2553, %v2563
          %v2571 = vadd.f32 %v2554, %v2563
          %v2572 = vadd.f32 %v2555, %v2563
          %v2573 = vadd.f32 %v2556, %v2563
          %v2574 = vadd.f32 %v2557, %v2563
          %v2575 = vadd.f32 %v2558, %v2563
          %v2576 = vadd.f32 %v2559, %v2563
          %2577 = vst [vmem:[%s328] sm:$0xff] %v2564
          %2578 = vst [vmem:[%s328 + $0x8] sm:$0xff] %v2565
          %2579 = vst [vmem:[%s328 + $0x10] sm:$0xff] %v2566
          %2580 = vst [vmem:[%s328 + $0x18] sm:$0xff] %v2567
          %2581 = vst [vmem:[%s328 + $0x20] sm:$0xff] %v2568
          %2582 = vst [vmem:[%s328 + $0x28] sm:$0xff] %v2569
          %2583 = vst [vmem:[%s328 + $0x30] sm:$0xff] %v2570
          %2584 = vst [vmem:[%s328 + $0x38] sm:$0xff] %v2571
          %2585 = vst [vmem:[%s328 + $0x40] sm:$0xff] %v2572
          %2586 = vst [vmem:[%s328 + $0x48] sm:$0xff] %v2573
          %2587 = vst [vmem:[%s328 + $0x50] sm:$0xff] %v2574
          %2588 = vst [vmem:[%s328 + $0x58] sm:$0xff] %v2575
          %2589 = vst [vmem:[%s328 + $0x60] sm:$0xff] %v2576
        $region72: #{tpu_custom_call.1} parent=43 // pred_fallthru
          _
        %s2590 = sand.u32 %s179, 1
        %s2591 = scalar_lea.sflag [#allocation4], %s2590
        %s2592 = sand.u32 %s179, 1
        %s2593 = smul.addr %s2592, 104
        %s2594 = scalar_lea.vmem [#allocation11], %s2593
        // Predicated region
        $region73: #{tpu_custom_call.1} parent=43 // pred_check
          %p2595 = pneg %p189
        $region74: #{tpu_custom_call.1} parent=43 // pred_check_branch
          %2597 = sbr.rel (%p2595) target = $region76
        $region75: #{tpu_custom_call.1} parent=43 // pred_region
          %s2598 = smul.u32 13, %s27
          %s2600 = ssub.s32 1664, 1664
          %2601 = vsyncadd %s2591, %s2600
          %s2602 = smul.addr %s2598, 128
          %s2603 = scalar_lea.hbm %s6, %s2602
          %s2604 = sshll.u32 %s2594, 4
          %s2605 = int_to_ptr.vmem [resolvable:$true] %s2604
          %2610 = dma.vmem_to_hbm [thread:$0]  %s2605, 1664, %s2603, %s2591, 128, 128, 8
        $region76: #{tpu_custom_call.1} parent=43 // pred_fallthru
          _
      $region44: #{tpu_custom_call.1} parent=5 // pred_fallthru
        _
      %p2611 = scmp.le.s32.totalorder 2, %s18
      // Predicated region
      $region77: #{tpu_custom_call.1} parent=5 // pred_check
        %p2612 = pneg %p2611
      $region78: #{tpu_custom_call.1} parent=5 // pred_check_branch
        %2614 = sbr.rel (%p2612) target = $region80
      $region79: #{tpu_custom_call.1} parent=5 // pred_region
        %s2615 = ssub.s32 %s18, 2
        // Predicated region
        $region81: #{tpu_custom_call.1} parent=79 // pred_check
          %p2616 = pneg %p195
        $region82: #{tpu_custom_call.1} parent=79 // pred_check_branch
          %2618 = sbr.rel (%p2616) target = $region84
        $region83: #{tpu_custom_call.1} parent=79 // pred_region
          %s2619 = sand.u32 %s180, 1
          %s2620 = scalar_lea.sflag [#allocation4], %s2619
          %s2621 = sand.u32 %s180, 1
          %s2622 = smul.addr %s2621, 104
          %s2623 = scalar_lea.vmem [#allocation11], %s2622
          %2624 = dma.done %s2620, 1664
        $region84: #{tpu_custom_call.1} parent=79 // pred_fallthru
          _
      $region80: #{tpu_custom_call.1} parent=5 // pred_fallthru
        _
    $region6: #{tpu_custom_call.1} parent=1 // loop_footer
      %s22 = sadd.s32 1, %s18
    $region7: #{tpu_custom_call.1} parent=1 // loop_footer_branch
      %17 = sbr.rel target = $region3
    $region8: #{tpu_custom_call.1} parent=1 // loop_exit
      _
    %2625 = vsyncpa [#allocation3], 1
    %s2626 = scalar_lea.sflag [#allocation3], 1
    %2627 = vsyncpa %s2626, 1
    %2628 = vsyncpa [#allocation6], 1
    %2629 = vsyncpa [#allocation9], 1
    %2630 = vsyncpa [#allocation4], 1
    %s2631 = scalar_lea.sflag [#allocation4], 1
    %2632 = vsyncpa %s2631, 1

</llo_original>
